<compile_context>
chip_gen: v6e
topology: v6e:2x2x1
jax: 0.10.0
libtpu: 0.0.40
codegen_flags: <defaults>
</compile_context>

<pallas_src>
import math

import jax
import jax.numpy as jnp
import numpy as np
from jax.experimental import pallas as pl
from jax.experimental.pallas import tpu as pltpu

# ----- config (consistent with TransformerConfig) -----
B = 2           # batch
T = 8           # seq len (== max_seq_len)
C = 32          # embed_dim
H = 4           # num_heads
DH = C // H     # head dim
BT = B * T
BH = B * H
SCALE = 1.0 / math.sqrt(DH)


def _attn_kernel(x_ref, wqkv_ref, bqkv_ref, wp_ref, bp_ref, out_ref):
    # Fused Q/K/V projection: (BT, C) @ (C, 3C) + (1, 3C). SCALE is pre-folded
    # into the query columns of wqkv/bqkv at weight-load time.
    x = x_ref[...]                                                   # (BT, C)
    qkv = jnp.dot(x, wqkv_ref[...],
                  preferred_element_type=jnp.float32) + bqkv_ref[...]
    q = qkv[:, :C]                                                   # scaled q
    k = qkv[:, C:2 * C]
    v = qkv[:, 2 * C:]

    # Sublane-aligned batch views (16 rows -> 2 x 8).
    q3 = q.reshape(B, T, C)
    k3 = k.reshape(B, T, C)
    v3 = v.reshape(B, T, C)

    # Regroup heads into a single leading batch dim: (H*B, T, DH), index = h*B + b.
    # (lane slices + leading-axis concat; the relayout happens exactly once per tensor)
    def to_heads(t3):
        return jnp.concatenate(
            [t3[:, :, h * DH:(h + 1) * DH] for h in range(H)], axis=0)

    qh = to_heads(q3)                                                # (HB, T, DH)
    kh = to_heads(k3)
    vh = to_heads(v3)

    # ONE batched contraction for all heads/batches (contract on last dims,
    # no explicit transpose of k).
    s = jnp.einsum("xtd,xsd->xts", qh, kh,
                   preferred_element_type=jnp.float32)               # (HB, T, T)

    # (T, T) causal mask, broadcast over the HB batch dim. Diagonal is always
    # kept, so exp(s - max) never sees an all -inf row.
    row = jax.lax.broadcasted_iota(jnp.int32, (T, T), 0)
    col = jax.lax.broadcasted_iota(jnp.int32, (T, T), 1)
    s = jnp.where(row >= col, s, -jnp.inf)

    # ONE softmax over the whole (HB, T, T) score tensor (exact math: one
    # reciprocal per row + multiply, so the 1e-5 f32 check still holds).
    m = jnp.max(s, axis=-1, keepdims=True)
    p = jnp.exp(s - m)
    inv = 1.0 / jnp.sum(p, axis=-1, keepdims=True)
    p = p * inv

    # ONE batched attention*value contraction.
    yh = jnp.einsum("xts,xsd->xtd", p, vh,
                    preferred_element_type=jnp.float32)              # (HB, T, DH)

    # Reassemble (BT, C): per-head leading-axis slice -> (BT, DH) -> lane concat
    # (four 8-lane slabs within one vreg).
    y2d = jnp.concatenate(
        [yh[h * B:(h + 1) * B].reshape(BT, DH) for h in range(H)], axis=-1)

    # Single fused output projection (K = C = 32) + bias.
    y = jnp.dot(y2d, wp_ref[...],
                preferred_element_type=jnp.float32) + bp_ref[...]    # (BT, C)

    # One lane-dense output slab [y | k | v]: single store, single writeback DMA.
    out_ref[...] = jnp.concatenate([y, k, v], axis=-1).astype(out_ref.dtype)


def fuse_qkv_params(wq, bq, wk, bk, wv, bv):
    """Done ONCE at weight-load time (hoisted out of the per-call path):
    fuse Q/K/V into one (C, 3C) projection and fold the attention scale into
    the query columns."""
    w_qkv = jnp.concatenate([wq * SCALE, wk, wv], axis=1)            # (C, 3C)
    b_qkv = jnp.concatenate([bq * SCALE, bk, bv], axis=1)            # (1, 3C)
    return w_qkv, b_qkv


@jax.jit
def causal_self_attention(x, w_qkv, b_qkv, wp, bp):
    """x: (B, T, C). w_qkv: (C, 3C), b_qkv: (1, 3C) (pre-fused, scale folded);
    wp: (C, C) in (in, out) layout; bp: (1, C)."""
    x2d = x.reshape(BT, C)

    vmem_spec = pl.BlockSpec(memory_space=pltpu.MemorySpace.VMEM)
    out = pl.pallas_call(
        _attn_kernel,
        out_shape=jax.ShapeDtypeStruct((BT, 3 * C), x.dtype),
        in_specs=[vmem_spec] * 5,
        out_specs=vmem_spec,
    )(x2d, w_qkv, b_qkv, wp, bp)

    y = out[:, :C].reshape(B, T, C)
    # KV returned as (B, H, T, DH) to match the PyTorch module; if the KV-cache
    # consumer accepts (B, T, H, DH), drop the transpose (wrapper-level, cheap).
    this_k = out[:, C:2 * C].reshape(B, T, H, DH).transpose(0, 2, 1, 3)
    this_v = out[:, 2 * C:].reshape(B, T, H, DH).transpose(0, 2, 1, 3)
    return y, {"k": this_k, "v": this_v}


def _reference(x, wq, bq, wk, bk, wv, bv, wp, bp):
    """Plain-JAX replica of the PyTorch forward (attention_impl='original', past_kv=None)."""
    q = (x @ wq + bq).reshape(B, T, H, DH).transpose(0, 2, 1, 3)
    k = (x @ wk + bk).reshape(B, T, H, DH).transpose(0, 2, 1, 3)
    v = (x @ wv + bv).reshape(B, T, H, DH).transpose(0, 2, 1, 3)
    att = jnp.einsum("bhtd,bhsd->bhts", q, k) * SCALE
    mask = jnp.tril(jnp.ones((T, T)))
    att = jnp.where(mask == 0, -jnp.inf, att)
    att = jax.nn.softmax(att, axis=-1)
    y = jnp.einsum("bhts,bhsd->bhtd", att, v)
    y = y.transpose(0, 2, 1, 3).reshape(B, T, C)
    y = y @ wp + bp
    return y, k, v


if __name__ == "__main__":
    key = jax.random.PRNGKey(0)
    kx, k0, k1, k2, k3, k4, k5, k6, k7 = jax.random.split(key, 9)

    x = jax.random.normal(kx, (B, T, C), dtype=jnp.float32)

    # nn.Linear(C, C) weights, stored pre-transposed to (in, out)
    init = lambda kk: jax.random.normal(kk, (C, C), dtype=jnp.float32) * (1.0 / math.sqrt(C))
    binit = lambda kk: jax.random.normal(kk, (1, C), dtype=jnp.float32) * 0.02
    wq, bq = init(k0), binit(k1)
    wk, bk = init(k2), binit(k3)
    wv, bv = init(k4), binit(k5)
    wp, bp = init(k6), binit(k7)

    # Weight fusion + scale fold done once, outside the per-call path.
    w_qkv, b_qkv = fuse_qkv_params(wq, bq, wk, bk, wv, bv)
    w_qkv, b_qkv = jax.block_until_ready((w_qkv, b_qkv))

    y, kv = causal_self_attention(x, w_qkv, b_qkv, wp, bp)
    jax.block_until_ready((y, kv))

    y_ref, k_ref, v_ref = _reference(x, wq, bq, wk, bk, wv, bv, wp, bp)
    np.testing.assert_allclose(np.asarray(y), np.asarray(y_ref), rtol=1e-5, atol=1e-5)
    np.testing.assert_allclose(np.asarray(kv["k"]), np.asarray(k_ref), rtol=1e-5, atol=1e-5)
    np.testing.assert_allclose(np.asarray(kv["v"]), np.asarray(v_ref), rtol=1e-5, atol=1e-5)

    print("KERNEL_OK")
</pallas_src>

<mosaic_0001>
module attributes {stable_mosaic.version = 11 : i64} {
  func.func @_attn_kernel(%arg0: memref<16x32xf32, #tpu.memory_space<vmem>>, %arg1: memref<32x96xf32, #tpu.memory_space<vmem>>, %arg2: memref<1x96xf32, #tpu.memory_space<vmem>>, %arg3: memref<32x32xf32, #tpu.memory_space<vmem>>, %arg4: memref<1x32xf32, #tpu.memory_space<vmem>>, %arg5: memref<16x96xf32, #tpu.memory_space<vmem>>) attributes {dimension_semantics = [], scalar_prefetch = 0 : i64, scratch_operands = 0 : i64, tpu.core_type = #tpu.core_type<tc>} {
    %c0 = arith.constant 0 : index
    %c0_0 = arith.constant 0 : index
    %0 = vector.load %arg0[%c0, %c0_0] : memref<16x32xf32, #tpu.memory_space<vmem>>, vector<16x32xf32>
    %c0_1 = arith.constant 0 : index
    %c0_2 = arith.constant 0 : index
    %1 = vector.load %arg1[%c0_1, %c0_2] : memref<32x96xf32, #tpu.memory_space<vmem>>, vector<32x96xf32>
    %cst = arith.constant dense<0.000000e+00> : vector<16x96xf32>
    %2 = tpu.matmul %0, %1, %cst {dimension_numbers = #tpu.dot_dimension_numbers<[1], [0], [0], [1], [0, 0, 1, 1], [], []>} : vector<16x32xf32>, vector<32x96xf32>, vector<16x96xf32> -> vector<16x96xf32>
    %c0_3 = arith.constant 0 : index
    %c0_4 = arith.constant 0 : index
    %3 = vector.load %arg2[%c0_3, %c0_4] : memref<1x96xf32, #tpu.memory_space<vmem>>, vector<1x96xf32>
    %4 = vector.broadcast %3 : vector<1x96xf32> to vector<16x96xf32>
    %5 = arith.addf %2, %4 : vector<16x96xf32>
    %6 = vector.extract_strided_slice %5 {offsets = [0, 0], sizes = [16, 32], strides = [1, 1]} : vector<16x96xf32> to vector<16x32xf32>
    %7 = vector.extract_strided_slice %5 {offsets = [0, 32], sizes = [16, 32], strides = [1, 1]} : vector<16x96xf32> to vector<16x32xf32>
    %8 = vector.extract_strided_slice %5 {offsets = [0, 64], sizes = [16, 32], strides = [1, 1]} : vector<16x96xf32> to vector<16x32xf32>
    %9 = vector.shape_cast %6 : vector<16x32xf32> to vector<2x8x32xf32>
    %10 = vector.shape_cast %7 : vector<16x32xf32> to vector<2x8x32xf32>
    %11 = vector.shape_cast %8 : vector<16x32xf32> to vector<2x8x32xf32>
    %12 = vector.extract_strided_slice %9 {offsets = [0, 0, 0], sizes = [2, 8, 8], strides = [1, 1, 1]} : vector<2x8x32xf32> to vector<2x8x8xf32>
    %13 = vector.extract_strided_slice %9 {offsets = [0, 0, 8], sizes = [2, 8, 8], strides = [1, 1, 1]} : vector<2x8x32xf32> to vector<2x8x8xf32>
    %14 = vector.extract_strided_slice %9 {offsets = [0, 0, 16], sizes = [2, 8, 8], strides = [1, 1, 1]} : vector<2x8x32xf32> to vector<2x8x8xf32>
    %15 = vector.extract_strided_slice %9 {offsets = [0, 0, 24], sizes = [2, 8, 8], strides = [1, 1, 1]} : vector<2x8x32xf32> to vector<2x8x8xf32>
    %16 = tpu.concatenate %12, %13, %14, %15 in 0 : vector<2x8x8xf32>, vector<2x8x8xf32>, vector<2x8x8xf32>, vector<2x8x8xf32> -> vector<8x8x8xf32>
    %17 = vector.extract_strided_slice %10 {offsets = [0, 0, 0], sizes = [2, 8, 8], strides = [1, 1, 1]} : vector<2x8x32xf32> to vector<2x8x8xf32>
    %18 = vector.extract_strided_slice %10 {offsets = [0, 0, 8], sizes = [2, 8, 8], strides = [1, 1, 1]} : vector<2x8x32xf32> to vector<2x8x8xf32>
    %19 = vector.extract_strided_slice %10 {offsets = [0, 0, 16], sizes = [2, 8, 8], strides = [1, 1, 1]} : vector<2x8x32xf32> to vector<2x8x8xf32>
    %20 = vector.extract_strided_slice %10 {offsets = [0, 0, 24], sizes = [2, 8, 8], strides = [1, 1, 1]} : vector<2x8x32xf32> to vector<2x8x8xf32>
    %21 = tpu.concatenate %17, %18, %19, %20 in 0 : vector<2x8x8xf32>, vector<2x8x8xf32>, vector<2x8x8xf32>, vector<2x8x8xf32> -> vector<8x8x8xf32>
    %22 = vector.extract_strided_slice %11 {offsets = [0, 0, 0], sizes = [2, 8, 8], strides = [1, 1, 1]} : vector<2x8x32xf32> to vector<2x8x8xf32>
    %23 = vector.extract_strided_slice %11 {offsets = [0, 0, 8], sizes = [2, 8, 8], strides = [1, 1, 1]} : vector<2x8x32xf32> to vector<2x8x8xf32>
    %24 = vector.extract_strided_slice %11 {offsets = [0, 0, 16], sizes = [2, 8, 8], strides = [1, 1, 1]} : vector<2x8x32xf32> to vector<2x8x8xf32>
    %25 = vector.extract_strided_slice %11 {offsets = [0, 0, 24], sizes = [2, 8, 8], strides = [1, 1, 1]} : vector<2x8x32xf32> to vector<2x8x8xf32>
    %26 = tpu.concatenate %22, %23, %24, %25 in 0 : vector<2x8x8xf32>, vector<2x8x8xf32>, vector<2x8x8xf32>, vector<2x8x8xf32> -> vector<8x8x8xf32>
    "tpu.trace_start"() <{level = 10 : i32, message = "xtd,xsd->xts"}> : () -> ()
    %cst_5 = arith.constant dense<0.000000e+00> : vector<8x8x8xf32>
    %27 = tpu.matmul %16, %21, %cst_5 {dimension_numbers = #tpu.dot_dimension_numbers<[2], [2], [1], [1], [0, 0, 0, 1, 1, 1], [0], [0]>} : vector<8x8x8xf32>, vector<8x8x8xf32>, vector<8x8x8xf32> -> vector<8x8x8xf32>
    "tpu.trace_stop"() : () -> ()
    %28 = tpu.iota {dimensions = array<i32: 0>} : vector<8x8xi32>
    %29 = tpu.iota {dimensions = array<i32: 1>} : vector<8x8xi32>
    %30 = arith.cmpi sge, %28, %29 : vector<8x8xi32>
    %cst_6 = arith.constant 0xFF800000 : f32
    %31 = vector.shape_cast %30 : vector<8x8xi1> to vector<1x8x8xi1>
    %32 = vector.broadcast %31 : vector<1x8x8xi1> to vector<8x8x8xi1>
    %33 = vector.broadcast %cst_6 : f32 to vector<8x8x8xf32>
    %34 = arith.select %32, %27, %33 : vector<8x8x8xi1>, vector<8x8x8xf32>
    %cst_7 = arith.constant dense<0xFF800000> : vector<8x8xf32>
    %35 = vector.multi_reduction <maximumf>, %34, %cst_7 [2] : vector<8x8x8xf32> to vector<8x8xf32>
    %36 = vector.shape_cast %35 : vector<8x8xf32> to vector<8x8x1xf32>
    %37 = vector.broadcast %36 : vector<8x8x1xf32> to vector<8x8x8xf32>
    %38 = arith.subf %34, %37 : vector<8x8x8xf32>
    %39 = math.exp %38 : vector<8x8x8xf32>
    %cst_8 = arith.constant dense<0.000000e+00> : vector<8x8xf32>
    %40 = vector.multi_reduction <add>, %39, %cst_8 [2] : vector<8x8x8xf32> to vector<8x8xf32>
    %41 = vector.shape_cast %40 : vector<8x8xf32> to vector<8x8x1xf32>
    %cst_9 = arith.constant 1.000000e+00 : f32
    %42 = vector.broadcast %cst_9 : f32 to vector<8x8x1xf32>
    %43 = arith.divf %42, %41 : vector<8x8x1xf32>
    %44 = vector.broadcast %43 : vector<8x8x1xf32> to vector<8x8x8xf32>
    %45 = arith.mulf %39, %44 : vector<8x8x8xf32>
    "tpu.trace_start"() <{level = 10 : i32, message = "xts,xsd->xtd"}> : () -> ()
    %cst_10 = arith.constant dense<0.000000e+00> : vector<8x8x8xf32>
    %46 = tpu.matmul %45, %26, %cst_10 {dimension_numbers = #tpu.dot_dimension_numbers<[2], [1], [1], [2], [0, 0, 0, 1, 1, 2], [0], [0]>} : vector<8x8x8xf32>, vector<8x8x8xf32>, vector<8x8x8xf32> -> vector<8x8x8xf32>
    "tpu.trace_stop"() : () -> ()
    %47 = vector.extract_strided_slice %46 {offsets = [0, 0, 0], sizes = [2, 8, 8], strides = [1, 1, 1]} : vector<8x8x8xf32> to vector<2x8x8xf32>
    %48 = vector.shape_cast %47 : vector<2x8x8xf32> to vector<16x8xf32>
    %49 = vector.extract_strided_slice %46 {offsets = [2, 0, 0], sizes = [2, 8, 8], strides = [1, 1, 1]} : vector<8x8x8xf32> to vector<2x8x8xf32>
    %50 = vector.shape_cast %49 : vector<2x8x8xf32> to vector<16x8xf32>
    %51 = vector.extract_strided_slice %46 {offsets = [4, 0, 0], sizes = [2, 8, 8], strides = [1, 1, 1]} : vector<8x8x8xf32> to vector<2x8x8xf32>
    %52 = vector.shape_cast %51 : vector<2x8x8xf32> to vector<16x8xf32>
    %53 = vector.extract_strided_slice %46 {offsets = [6, 0, 0], sizes = [2, 8, 8], strides = [1, 1, 1]} : vector<8x8x8xf32> to vector<2x8x8xf32>
    %54 = vector.shape_cast %53 : vector<2x8x8xf32> to vector<16x8xf32>
    %55 = tpu.concatenate %48, %50, %52, %54 in 1 : vector<16x8xf32>, vector<16x8xf32>, vector<16x8xf32>, vector<16x8xf32> -> vector<16x32xf32>
    %c0_11 = arith.constant 0 : index
    %c0_12 = arith.constant 0 : index
    %56 = vector.load %arg3[%c0_11, %c0_12] : memref<32x32xf32, #tpu.memory_space<vmem>>, vector<32x32xf32>
    %cst_13 = arith.constant dense<0.000000e+00> : vector<16x32xf32>
    %57 = tpu.matmul %55, %56, %cst_13 {dimension_numbers = #tpu.dot_dimension_numbers<[1], [0], [0], [1], [0, 0, 1, 1], [], []>} : vector<16x32xf32>, vector<32x32xf32>, vector<16x32xf32> -> vector<16x32xf32>
    %c0_14 = arith.constant 0 : index
    %c0_15 = arith.constant 0 : index
    %58 = vector.load %arg4[%c0_14, %c0_15] : memref<1x32xf32, #tpu.memory_space<vmem>>, vector<1x32xf32>
    %59 = vector.broadcast %58 : vector<1x32xf32> to vector<16x32xf32>
    %60 = arith.addf %57, %59 : vector<16x32xf32>
    %61 = tpu.concatenate %60, %7, %8 in 1 : vector<16x32xf32>, vector<16x32xf32>, vector<16x32xf32> -> vector<16x96xf32>
    %c0_16 = arith.constant 0 : index
    %c0_17 = arith.constant 0 : index
    %62 = vector.load %arg5[%c0_16, %c0_17] : memref<16x96xf32, #tpu.memory_space<vmem>>, vector<16x96xf32>
    tpu.vector_store %arg5[%c0_16, %c0_17], %61 {strides = array<i32>} : memref<16x96xf32, #tpu.memory_space<vmem>>, vector<16x96xf32>,
    return
  }
}

</mosaic_0001>

<llo_original>
// kernel: causal_self_attention.1
$region0: #{causal_self_attention.1}
  #allocation0 [shape = 'u32[]', space=smem, size = 0x4, offset = 0x4, fixed_abs, tag = 'smem constant byte address 0x4 - core index']
  #allocation1 [shape = 'u32[144,128]{1,0:T(1,128)}', space=vmem, size = 0x12000, scoped, tag = 'internal scratch']
  %s0 = inlined_call_operand.hbm [shape: f32[16,32], index: 0, kind: input, shape index: {}]
  %s1 = inlined_call_operand.hbm [shape: f32[32,96], index: 1, kind: input, shape index: {}]
  %s2 = inlined_call_operand.vmem [shape: f32[1,96], index: 2, kind: input, shape index: {}]
  %s3 = inlined_call_operand.hbm [shape: f32[32,32], index: 3, kind: input, shape index: {}]
  %s4 = inlined_call_operand.vmem [shape: f32[1,32], index: 4, kind: input, shape index: {}]
  %s5 = inlined_call_operand.vmem [shape: f32[16,96], index: 5, kind: output, shape index: {}]
  %s6 = sld [smem:[#allocation0]]
  $region42: #{causal_self_attention.1} parent=0
    _
  %s8 = ssub.s32 1, %s6
  %s9 = scalar_select 0, %s8, %s6
  $region1: #{causal_self_attention.1} parent=0
    #allocation2 [shape = 'u8[8192]{0}', space=vmem, size = 0x2000, scoped, tag = 'input window, operand 0, single buffered']
    #allocation3 [shape = 's32[1]{0}', space=sflag, size = 0x4, scoped, tag = 'scoped memory for causal_self_attention.1']
    #allocation4 [shape = 'u8[16384]{0}', space=vmem, size = 0x4000, scoped, tag = 'input window, operand 1, single buffered']
    #allocation5 [shape = 's32[1]{0}', space=sflag, size = 0x4, scoped, tag = 'scoped memory for causal_self_attention.1']
    #allocation6 [shape = 'u8[16384]{0}', space=vmem, size = 0x4000, scoped, tag = 'input window, operand 3, single buffered']
    %10 = vsyncpa [#allocation3], 0
    %11 = vsyncpa [#allocation5], 0
    // Predicated region
    $region2: #{causal_self_attention.1} parent=1 // pred_check
      _
    $region3: #{causal_self_attention.1} parent=1 // pred_check_branch
      %13 = sbr.rel (0) target = $region5
    $region4: #{causal_self_attention.1} parent=1 // pred_region
      %s15 = ssub.s32 256, 256
      %16 = vsyncadd [#allocation3], %s15
      %s17 = sshll.u32 [#allocation2], 4
      %s18 = int_to_ptr.vmem [resolvable:$true] %s17
      %23 = dma.hbm_to_vmem [thread:$0]  %s0, 256, %s18, [#allocation3], 128, 128, 8
    $region5: #{causal_self_attention.1} parent=1 // pred_fallthru
      _
    // Predicated region
    $region6: #{causal_self_attention.1} parent=1 // pred_check
      _
    $region7: #{causal_self_attention.1} parent=1 // pred_check_branch
      %25 = sbr.rel (0) target = $region9
    $region8: #{causal_self_attention.1} parent=1 // pred_region
      %s27 = ssub.s32 512, 512
      %28 = vsyncadd [#allocation5], %s27
      %s29 = sshll.u32 [#allocation4], 4
      %s30 = int_to_ptr.vmem [resolvable:$true] %s29
      %35 = dma.hbm_to_vmem [thread:$0]  %s1, 512, %s30, [#allocation5], 128, 128, 8
    $region9: #{causal_self_attention.1} parent=1 // pred_fallthru
      _
    // Predicated region
    $region10: #{causal_self_attention.1} parent=1 // pred_check
      _
    $region11: #{causal_self_attention.1} parent=1 // pred_check_branch
      %37 = sbr.rel (0) target = $region13
    $region12: #{causal_self_attention.1} parent=1 // pred_region
      _
    $region13: #{causal_self_attention.1} parent=1 // pred_fallthru
      _
    // Predicated region
    $region14: #{causal_self_attention.1} parent=1 // pred_check
      _
    $region15: #{causal_self_attention.1} parent=1 // pred_check_branch
      %39 = sbr.rel (0) target = $region17
    $region16: #{causal_self_attention.1} parent=1 // pred_region
      %s41 = ssub.s32 512, 512
      %42 = vsyncadd [#allocation5], %s41
      %s43 = sshll.u32 [#allocation6], 4
      %s44 = int_to_ptr.vmem [resolvable:$true] %s43
      %49 = dma.hbm_to_vmem [thread:$0]  %s3, 512, %s44, [#allocation5], 128, 128, 8
    $region17: #{causal_self_attention.1} parent=1 // pred_fallthru
      _
    // Predicated region
    $region18: #{causal_self_attention.1} parent=1 // pred_check
      _
    $region19: #{causal_self_attention.1} parent=1 // pred_check_branch
      %51 = sbr.rel (0) target = $region21
    $region20: #{causal_self_attention.1} parent=1 // pred_region
      _
    $region21: #{causal_self_attention.1} parent=1 // pred_fallthru
      _
    // Predicated region
    $region22: #{causal_self_attention.1} parent=1 // pred_check
      _
    $region23: #{causal_self_attention.1} parent=1 // pred_check_branch
      %53 = sbr.rel (0) target = $region25
    $region24: #{causal_self_attention.1} parent=1 // pred_region
      %54 = dma.done [#allocation3], 256
    $region25: #{causal_self_attention.1} parent=1 // pred_fallthru
      _
    // Predicated region
    $region26: #{causal_self_attention.1} parent=1 // pred_check
      _
    $region27: #{causal_self_attention.1} parent=1 // pred_check_branch
      %56 = sbr.rel (0) target = $region29
    $region28: #{causal_self_attention.1} parent=1 // pred_region
      %57 = dma.done [#allocation5], 512
    $region29: #{causal_self_attention.1} parent=1 // pred_fallthru
      _
    // Predicated region
    $region30: #{causal_self_attention.1} parent=1 // pred_check
      _
    $region31: #{causal_self_attention.1} parent=1 // pred_check_branch
      %59 = sbr.rel (0) target = $region33
    $region32: #{causal_self_attention.1} parent=1 // pred_region
      %60 = dma.done [#allocation5], 512
    $region33: #{causal_self_attention.1} parent=1 // pred_fallthru
      _
    %v61 = vld [vmem:[#allocation2] sm:$0xff]
    %v62 = vld [vmem:[#allocation2 + $0x8] sm:$0xff]
    %v63 = vld [vmem:[#allocation4] sm:$0xff]
    %v64 = vld [vmem:[#allocation4 + $0x8] sm:$0xff]
    %v65 = vld [vmem:[#allocation4 + $0x10] sm:$0xff]
    %v66 = vld [vmem:[#allocation4 + $0x18] sm:$0xff]
    %v67 = vld [vmem:[%s2] sm:$0x1]
    %v69 = vlaneseq
    %v70 = vshrl.u32 %v69, 7
    %v71 = vsub.s32 0, %v70
    %v72 = vrot.slane %v67, %v71
    %vm74 = vcmask 261120
    %v76 = vsel %vm74, %v61, 0
    %v79 = vsel %vm74, %v62, 0
    %81 = vmatprep.subr.mxu0 0.0
    %82 = vmatpush1.msra.mxu0 0.0
    %83 = vmatprep.subr.mxu0 0.0
    %84 = vmatpush1.msra.mxu0 0.0
    %85 = vmatprep.subr.mxu0 0.0
    %86 = vmatpush1.msra.mxu0 0.0
    %87 = vmatprep.subr.mxu0 0.0
    %88 = vmatpush1.msra.mxu0 0.0
    %89 = vmatprep.subr.mxu0 0.0
    %90 = vmatpush1.msra.mxu0 0.0
    %91 = vmatprep.subr.mxu0 0.0
    %92 = vmatpush1.msra.mxu0 0.0
    %93 = vmatprep.subr.mxu0 0.0
    %94 = vmatpush1.msra.mxu0 0.0
    %95 = vmatprep.subr.mxu0 0.0
    %96 = vmatpush1.msra.mxu0 0.0
    %97 = vmatprep.subr.mxu0 0.0
    %98 = vmatpush1.msra.mxu0 0.0
    %99 = vmatprep.subr.mxu0 0.0
    %100 = vmatpush1.msra.mxu0 0.0
    %101 = vmatprep.subr.mxu0 0.0
    %102 = vmatpush1.msra.mxu0 0.0
    %103 = vmatprep.subr.mxu0 0.0
    %104 = vmatpush1.msra.mxu0 0.0
    %105 = vmatprep.subr.mxu0 0.0
    %106 = vmatpush1.msra.mxu0 %v66
    %107 = vmatprep.subr.mxu0 0.0
    %108 = vmatpush1.msra.mxu0 %v65
    %109 = vmatprep.subr.mxu0 0.0
    %110 = vmatpush1.msra.mxu0 %v64
    %111 = vmatprep.subr.mxu0 0.0
    %112 = vmatpush1.msra.mxu0 %v63
    %113 = vmatprep.subr.mxu0 0.0
    %114 = vmatpush2.msra.mxu0 0.0
    %115 = vmatprep.subr.mxu0 0.0
    %116 = vmatpush2.msra.mxu0 0.0
    %117 = vmatprep.subr.mxu0 0.0
    %118 = vmatpush2.msra.mxu0 0.0
    %119 = vmatprep.subr.mxu0 0.0
    %120 = vmatpush2.msra.mxu0 0.0
    %121 = vmatprep.subr.mxu0 0.0
    %122 = vmatpush2.msra.mxu0 0.0
    %123 = vmatprep.subr.mxu0 0.0
    %124 = vmatpush2.msra.mxu0 0.0
    %125 = vmatprep.subr.mxu0 0.0
    %126 = vmatpush2.msra.mxu0 0.0
    %127 = vmatprep.subr.mxu0 0.0
    %128 = vmatpush2.msra.mxu0 0.0
    %129 = vmatprep.subr.mxu0 0.0
    %130 = vmatpush2.msra.mxu0 0.0
    %131 = vmatprep.subr.mxu0 0.0
    %132 = vmatpush2.msra.mxu0 0.0
    %133 = vmatprep.subr.mxu0 0.0
    %134 = vmatpush2.msra.mxu0 0.0
    %135 = vmatprep.subr.mxu0 0.0
    %136 = vmatpush2.msra.mxu0 0.0
    %137 = vmatprep.subr.mxu0 0.0
    %138 = vmatpush2.msra.mxu0 0.0
    %139 = vmatprep.subr.mxu0 0.0
    %140 = vmatpush2.msra.mxu0 0.0
    %141 = vmatprep.subr.mxu0 0.0
    %142 = vmatpush2.msra.mxu0 0.0
    %143 = vmatprep.subr.mxu0 0.0
    %144 = vmatpush2.msra.mxu0 0.0
    %145 = vmatprep.mubr.f32.mxu0 0.0
    %146 = vmatmul.mubr.f32.gmra.mxu0 %v76
    %v147 = vpop.f32.mrf.mxu0
    %v148 = vadd.f32 %v72, %v147
    %v149 = vpop.f32.mrf.mxu0
    %150 = vmatprep.mubr.f32.mxu0 0.0
    %151 = vmatmul.mubr.f32.gmra.mxu0 %v79
    %v152 = vpop.f32.mrf.mxu0
    %v153 = vadd.f32 %v72, %v152
    %v154 = vpop.f32.mrf.mxu0
    %155 = vdwg.mxu0
    %158 = vrot.lane.b32.xlu0 %v148, 120
    %v159 = vpop.permute.xlu0 %158
    %160 = vrot.lane.b32.xlu0 %v153, 120
    %v161 = vpop.permute.xlu0 %160
    %162 = vrot.lane.b32.xlu0 %v148, 112
    %v163 = vpop.permute.xlu0 %162
    %164 = vrot.lane.b32.xlu0 %v153, 112
    %v165 = vpop.permute.xlu0 %164
    %166 = vrot.lane.b32.xlu0 %v148, 104
    %v167 = vpop.permute.xlu0 %166
    %168 = vrot.lane.b32.xlu0 %v153, 104
    %v169 = vpop.permute.xlu0 %168
    %170 = vrot.lane.b32.xlu0 %v148, 96
    %v171 = vpop.permute.xlu0 %170
    %vm172 = vcmask 64512
    %v173 = vsel %vm172, %v148, 0
    %v175 = vsel %vm172, %v171, 0
    %177 = vmatprep.subr.mxu0 0.0
    %178 = vmatpush1.xpose.msra.mxu0 0.0
    %179 = vmatprep.subr.mxu0 0.0
    %180 = vmatpush1.xpose.msra.mxu0 0.0
    %181 = vmatprep.subr.mxu0 0.0
    %182 = vmatpush1.xpose.msra.mxu0 0.0
    %183 = vmatprep.subr.mxu0 0.0
    %184 = vmatpush1.xpose.msra.mxu0 0.0
    %185 = vmatprep.subr.mxu0 0.0
    %186 = vmatpush1.xpose.msra.mxu0 0.0
    %187 = vmatprep.subr.mxu0 0.0
    %188 = vmatpush1.xpose.msra.mxu0 0.0
    %189 = vmatprep.subr.mxu0 0.0
    %190 = vmatpush1.xpose.msra.mxu0 0.0
    %191 = vmatprep.subr.mxu0 0.0
    %192 = vmatpush1.xpose.msra.mxu0 0.0
    %193 = vmatprep.subr.mxu0 0.0
    %194 = vmatpush1.xpose.msra.mxu0 0.0
    %195 = vmatprep.subr.mxu0 0.0
    %196 = vmatpush1.xpose.msra.mxu0 0.0
    %197 = vmatprep.subr.mxu0 0.0
    %198 = vmatpush1.xpose.msra.mxu0 0.0
    %199 = vmatprep.subr.mxu0 0.0
    %200 = vmatpush1.xpose.msra.mxu0 0.0
    %201 = vmatprep.subr.mxu0 0.0
    %202 = vmatpush1.xpose.msra.mxu0 0.0
    %203 = vmatprep.subr.mxu0 0.0
    %204 = vmatpush1.xpose.msra.mxu0 0.0
    %205 = vmatprep.subr.mxu0 0.0
    %206 = vmatpush1.xpose.msra.mxu0 0.0
    %207 = vmatprep.subr.mxu0 0.0
    %208 = vmatpush1.xpose.msra.mxu0 %v175
    %209 = vmatprep.subr.mxu0 0.0
    %210 = vmatpush2.xpose.msra.mxu0 0.0
    %211 = vmatprep.subr.mxu0 0.0
    %212 = vmatpush2.xpose.msra.mxu0 0.0
    %213 = vmatprep.subr.mxu0 0.0
    %214 = vmatpush2.xpose.msra.mxu0 0.0
    %215 = vmatprep.subr.mxu0 0.0
    %216 = vmatpush2.xpose.msra.mxu0 0.0
    %217 = vmatprep.subr.mxu0 0.0
    %218 = vmatpush2.xpose.msra.mxu0 0.0
    %219 = vmatprep.subr.mxu0 0.0
    %220 = vmatpush2.xpose.msra.mxu0 0.0
    %221 = vmatprep.subr.mxu0 0.0
    %222 = vmatpush2.xpose.msra.mxu0 0.0
    %223 = vmatprep.subr.mxu0 0.0
    %224 = vmatpush2.xpose.msra.mxu0 0.0
    %225 = vmatprep.subr.mxu0 0.0
    %226 = vmatpush2.xpose.msra.mxu0 0.0
    %227 = vmatprep.subr.mxu0 0.0
    %228 = vmatpush2.xpose.msra.mxu0 0.0
    %229 = vmatprep.subr.mxu0 0.0
    %230 = vmatpush2.xpose.msra.mxu0 0.0
    %231 = vmatprep.subr.mxu0 0.0
    %232 = vmatpush2.xpose.msra.mxu0 0.0
    %233 = vmatprep.subr.mxu0 0.0
    %234 = vmatpush2.xpose.msra.mxu0 0.0
    %235 = vmatprep.subr.mxu0 0.0
    %236 = vmatpush2.xpose.msra.mxu0 0.0
    %237 = vmatprep.subr.mxu0 0.0
    %238 = vmatpush2.xpose.msra.mxu0 0.0
    %239 = vmatprep.subr.mxu0 0.0
    %240 = vmatpush2.xpose.msra.mxu0 0.0
    %241 = vmatprep.mubr.f32.mxu0 0.0
    %242 = vmatmul.mubr.f32.gmra.mxu0 %v173
    %v243 = vpop.f32.mrf.mxu0
    %v244 = vadd.f32 0.0, %v243
    %v245 = vpop.f32.mrf.mxu0
    %246 = vdwg.mxu0
    %247 = vrot.lane.b32.xlu0 %v153, 96
    %v248 = vpop.permute.xlu0 %247
    %v249 = vsel %vm172, %v153, 0
    %v251 = vsel %vm172, %v248, 0
    %253 = vmatprep.subr.mxu0 0.0
    %254 = vmatpush1.xpose.msra.mxu0 0.0
    %255 = vmatprep.subr.mxu0 0.0
    %256 = vmatpush1.xpose.msra.mxu0 0.0
    %257 = vmatprep.subr.mxu0 0.0
    %258 = vmatpush1.xpose.msra.mxu0 0.0
    %259 = vmatprep.subr.mxu0 0.0
    %260 = vmatpush1.xpose.msra.mxu0 0.0
    %261 = vmatprep.subr.mxu0 0.0
    %262 = vmatpush1.xpose.msra.mxu0 0.0
    %263 = vmatprep.subr.mxu0 0.0
    %264 = vmatpush1.xpose.msra.mxu0 0.0
    %265 = vmatprep.subr.mxu0 0.0
    %266 = vmatpush1.xpose.msra.mxu0 0.0
    %267 = vmatprep.subr.mxu0 0.0
    %268 = vmatpush1.xpose.msra.mxu0 0.0
    %269 = vmatprep.subr.mxu0 0.0
    %270 = vmatpush1.xpose.msra.mxu0 0.0
    %271 = vmatprep.subr.mxu0 0.0
    %272 = vmatpush1.xpose.msra.mxu0 0.0
    %273 = vmatprep.subr.mxu0 0.0
    %274 = vmatpush1.xpose.msra.mxu0 0.0
    %275 = vmatprep.subr.mxu0 0.0
    %276 = vmatpush1.xpose.msra.mxu0 0.0
    %277 = vmatprep.subr.mxu0 0.0
    %278 = vmatpush1.xpose.msra.mxu0 0.0
    %279 = vmatprep.subr.mxu0 0.0
    %280 = vmatpush1.xpose.msra.mxu0 0.0
    %281 = vmatprep.subr.mxu0 0.0
    %282 = vmatpush1.xpose.msra.mxu0 0.0
    %283 = vmatprep.subr.mxu0 0.0
    %284 = vmatpush1.xpose.msra.mxu0 %v251
    %285 = vmatprep.subr.mxu0 0.0
    %286 = vmatpush2.xpose.msra.mxu0 0.0
    %287 = vmatprep.subr.mxu0 0.0
    %288 = vmatpush2.xpose.msra.mxu0 0.0
    %289 = vmatprep.subr.mxu0 0.0
    %290 = vmatpush2.xpose.msra.mxu0 0.0
    %291 = vmatprep.subr.mxu0 0.0
    %292 = vmatpush2.xpose.msra.mxu0 0.0
    %293 = vmatprep.subr.mxu0 0.0
    %294 = vmatpush2.xpose.msra.mxu0 0.0
    %295 = vmatprep.subr.mxu0 0.0
    %296 = vmatpush2.xpose.msra.mxu0 0.0
    %297 = vmatprep.subr.mxu0 0.0
    %298 = vmatpush2.xpose.msra.mxu0 0.0
    %299 = vmatprep.subr.mxu0 0.0
    %300 = vmatpush2.xpose.msra.mxu0 0.0
    %301 = vmatprep.subr.mxu0 0.0
    %302 = vmatpush2.xpose.msra.mxu0 0.0
    %303 = vmatprep.subr.mxu0 0.0
    %304 = vmatpush2.xpose.msra.mxu0 0.0
    %305 = vmatprep.subr.mxu0 0.0
    %306 = vmatpush2.xpose.msra.mxu0 0.0
    %307 = vmatprep.subr.mxu0 0.0
    %308 = vmatpush2.xpose.msra.mxu0 0.0
    %309 = vmatprep.subr.mxu0 0.0
    %310 = vmatpush2.xpose.msra.mxu0 0.0
    %311 = vmatprep.subr.mxu0 0.0
    %312 = vmatpush2.xpose.msra.mxu0 0.0
    %313 = vmatprep.subr.mxu0 0.0
    %314 = vmatpush2.xpose.msra.mxu0 0.0
    %315 = vmatprep.subr.mxu0 0.0
    %316 = vmatpush2.xpose.msra.mxu0 0.0
    %317 = vmatprep.mubr.f32.mxu0 0.0
    %318 = vmatmul.mubr.f32.gmra.mxu0 %v249
    %v319 = vpop.f32.mrf.mxu0
    %v320 = vadd.f32 0.0, %v319
    %v321 = vpop.f32.mrf.mxu0
    %322 = vdwg.mxu0
    %323 = vrot.lane.b32.xlu0 %v159, 96
    %v324 = vpop.permute.xlu0 %323
    %v325 = vsel %vm172, %v159, 0
    %v327 = vsel %vm172, %v324, 0
    %329 = vmatprep.subr.mxu0 0.0
    %330 = vmatpush1.xpose.msra.mxu0 0.0
    %331 = vmatprep.subr.mxu0 0.0
    %332 = vmatpush1.xpose.msra.mxu0 0.0
    %333 = vmatprep.subr.mxu0 0.0
    %334 = vmatpush1.xpose.msra.mxu0 0.0
    %335 = vmatprep.subr.mxu0 0.0
    %336 = vmatpush1.xpose.msra.mxu0 0.0
    %337 = vmatprep.subr.mxu0 0.0
    %338 = vmatpush1.xpose.msra.mxu0 0.0
    %339 = vmatprep.subr.mxu0 0.0
    %340 = vmatpush1.xpose.msra.mxu0 0.0
    %341 = vmatprep.subr.mxu0 0.0
    %342 = vmatpush1.xpose.msra.mxu0 0.0
    %343 = vmatprep.subr.mxu0 0.0
    %344 = vmatpush1.xpose.msra.mxu0 0.0
    %345 = vmatprep.subr.mxu0 0.0
    %346 = vmatpush1.xpose.msra.mxu0 0.0
    %347 = vmatprep.subr.mxu0 0.0
    %348 = vmatpush1.xpose.msra.mxu0 0.0
    %349 = vmatprep.subr.mxu0 0.0
    %350 = vmatpush1.xpose.msra.mxu0 0.0
    %351 = vmatprep.subr.mxu0 0.0
    %352 = vmatpush1.xpose.msra.mxu0 0.0
    %353 = vmatprep.subr.mxu0 0.0
    %354 = vmatpush1.xpose.msra.mxu0 0.0
    %355 = vmatprep.subr.mxu0 0.0
    %356 = vmatpush1.xpose.msra.mxu0 0.0
    %357 = vmatprep.subr.mxu0 0.0
    %358 = vmatpush1.xpose.msra.mxu0 0.0
    %359 = vmatprep.subr.mxu0 0.0
    %360 = vmatpush1.xpose.msra.mxu0 %v327
    %361 = vmatprep.subr.mxu0 0.0
    %362 = vmatpush2.xpose.msra.mxu0 0.0
    %363 = vmatprep.subr.mxu0 0.0
    %364 = vmatpush2.xpose.msra.mxu0 0.0
    %365 = vmatprep.subr.mxu0 0.0
    %366 = vmatpush2.xpose.msra.mxu0 0.0
    %367 = vmatprep.subr.mxu0 0.0
    %368 = vmatpush2.xpose.msra.mxu0 0.0
    %369 = vmatprep.subr.mxu0 0.0
    %370 = vmatpush2.xpose.msra.mxu0 0.0
    %371 = vmatprep.subr.mxu0 0.0
    %372 = vmatpush2.xpose.msra.mxu0 0.0
    %373 = vmatprep.subr.mxu0 0.0
    %374 = vmatpush2.xpose.msra.mxu0 0.0
    %375 = vmatprep.subr.mxu0 0.0
    %376 = vmatpush2.xpose.msra.mxu0 0.0
    %377 = vmatprep.subr.mxu0 0.0
    %378 = vmatpush2.xpose.msra.mxu0 0.0
    %379 = vmatprep.subr.mxu0 0.0
    %380 = vmatpush2.xpose.msra.mxu0 0.0
    %381 = vmatprep.subr.mxu0 0.0
    %382 = vmatpush2.xpose.msra.mxu0 0.0
    %383 = vmatprep.subr.mxu0 0.0
    %384 = vmatpush2.xpose.msra.mxu0 0.0
    %385 = vmatprep.subr.mxu0 0.0
    %386 = vmatpush2.xpose.msra.mxu0 0.0
    %387 = vmatprep.subr.mxu0 0.0
    %388 = vmatpush2.xpose.msra.mxu0 0.0
    %389 = vmatprep.subr.mxu0 0.0
    %390 = vmatpush2.xpose.msra.mxu0 0.0
    %391 = vmatprep.subr.mxu0 0.0
    %392 = vmatpush2.xpose.msra.mxu0 0.0
    %393 = vmatprep.mubr.f32.mxu0 0.0
    %394 = vmatmul.mubr.f32.gmra.mxu0 %v325
    %v395 = vpop.f32.mrf.mxu0
    %v396 = vadd.f32 0.0, %v395
    %v397 = vpop.f32.mrf.mxu0
    %398 = vdwg.mxu0
    %399 = vrot.lane.b32.xlu0 %v161, 96
    %v400 = vpop.permute.xlu0 %399
    %v401 = vsel %vm172, %v161, 0
    %v403 = vsel %vm172, %v400, 0
    %405 = vmatprep.subr.mxu0 0.0
    %406 = vmatpush1.xpose.msra.mxu0 0.0
    %407 = vmatprep.subr.mxu0 0.0
    %408 = vmatpush1.xpose.msra.mxu0 0.0
    %409 = vmatprep.subr.mxu0 0.0
    %410 = vmatpush1.xpose.msra.mxu0 0.0
    %411 = vmatprep.subr.mxu0 0.0
    %412 = vmatpush1.xpose.msra.mxu0 0.0
    %413 = vmatprep.subr.mxu0 0.0
    %414 = vmatpush1.xpose.msra.mxu0 0.0
    %415 = vmatprep.subr.mxu0 0.0
    %416 = vmatpush1.xpose.msra.mxu0 0.0
    %417 = vmatprep.subr.mxu0 0.0
    %418 = vmatpush1.xpose.msra.mxu0 0.0
    %419 = vmatprep.subr.mxu0 0.0
    %420 = vmatpush1.xpose.msra.mxu0 0.0
    %421 = vmatprep.subr.mxu0 0.0
    %422 = vmatpush1.xpose.msra.mxu0 0.0
    %423 = vmatprep.subr.mxu0 0.0
    %424 = vmatpush1.xpose.msra.mxu0 0.0
    %425 = vmatprep.subr.mxu0 0.0
    %426 = vmatpush1.xpose.msra.mxu0 0.0
    %427 = vmatprep.subr.mxu0 0.0
    %428 = vmatpush1.xpose.msra.mxu0 0.0
    %429 = vmatprep.subr.mxu0 0.0
    %430 = vmatpush1.xpose.msra.mxu0 0.0
    %431 = vmatprep.subr.mxu0 0.0
    %432 = vmatpush1.xpose.msra.mxu0 0.0
    %433 = vmatprep.subr.mxu0 0.0
    %434 = vmatpush1.xpose.msra.mxu0 0.0
    %435 = vmatprep.subr.mxu0 0.0
    %436 = vmatpush1.xpose.msra.mxu0 %v403
    %437 = vmatprep.subr.mxu0 0.0
    %438 = vmatpush2.xpose.msra.mxu0 0.0
    %439 = vmatprep.subr.mxu0 0.0
    %440 = vmatpush2.xpose.msra.mxu0 0.0
    %441 = vmatprep.subr.mxu0 0.0
    %442 = vmatpush2.xpose.msra.mxu0 0.0
    %443 = vmatprep.subr.mxu0 0.0
    %444 = vmatpush2.xpose.msra.mxu0 0.0
    %445 = vmatprep.subr.mxu0 0.0
    %446 = vmatpush2.xpose.msra.mxu0 0.0
    %447 = vmatprep.subr.mxu0 0.0
    %448 = vmatpush2.xpose.msra.mxu0 0.0
    %449 = vmatprep.subr.mxu0 0.0
    %450 = vmatpush2.xpose.msra.mxu0 0.0
    %451 = vmatprep.subr.mxu0 0.0
    %452 = vmatpush2.xpose.msra.mxu0 0.0
    %453 = vmatprep.subr.mxu0 0.0
    %454 = vmatpush2.xpose.msra.mxu0 0.0
    %455 = vmatprep.subr.mxu0 0.0
    %456 = vmatpush2.xpose.msra.mxu0 0.0
    %457 = vmatprep.subr.mxu0 0.0
    %458 = vmatpush2.xpose.msra.mxu0 0.0
    %459 = vmatprep.subr.mxu0 0.0
    %460 = vmatpush2.xpose.msra.mxu0 0.0
    %461 = vmatprep.subr.mxu0 0.0
    %462 = vmatpush2.xpose.msra.mxu0 0.0
    %463 = vmatprep.subr.mxu0 0.0
    %464 = vmatpush2.xpose.msra.mxu0 0.0
    %465 = vmatprep.subr.mxu0 0.0
    %466 = vmatpush2.xpose.msra.mxu0 0.0
    %467 = vmatprep.subr.mxu0 0.0
    %468 = vmatpush2.xpose.msra.mxu0 0.0
    %469 = vmatprep.mubr.f32.mxu0 0.0
    %470 = vmatmul.mubr.f32.gmra.mxu0 %v401
    %v471 = vpop.f32.mrf.mxu0
    %v472 = vadd.f32 0.0, %v471
    %v473 = vpop.f32.mrf.mxu0
    %474 = vdwg.mxu0
    %475 = vrot.lane.b32.xlu0 %v163, 96
    %v476 = vpop.permute.xlu0 %475
    %v477 = vsel %vm172, %v163, 0
    %v479 = vsel %vm172, %v476, 0
    %481 = vmatprep.subr.mxu0 0.0
    %482 = vmatpush1.xpose.msra.mxu0 0.0
    %483 = vmatprep.subr.mxu0 0.0
    %484 = vmatpush1.xpose.msra.mxu0 0.0
    %485 = vmatprep.subr.mxu0 0.0
    %486 = vmatpush1.xpose.msra.mxu0 0.0
    %487 = vmatprep.subr.mxu0 0.0
    %488 = vmatpush1.xpose.msra.mxu0 0.0
    %489 = vmatprep.subr.mxu0 0.0
    %490 = vmatpush1.xpose.msra.mxu0 0.0
    %491 = vmatprep.subr.mxu0 0.0
    %492 = vmatpush1.xpose.msra.mxu0 0.0
    %493 = vmatprep.subr.mxu0 0.0
    %494 = vmatpush1.xpose.msra.mxu0 0.0
    %495 = vmatprep.subr.mxu0 0.0
    %496 = vmatpush1.xpose.msra.mxu0 0.0
    %497 = vmatprep.subr.mxu0 0.0
    %498 = vmatpush1.xpose.msra.mxu0 0.0
    %499 = vmatprep.subr.mxu0 0.0
    %500 = vmatpush1.xpose.msra.mxu0 0.0
    %501 = vmatprep.subr.mxu0 0.0
    %502 = vmatpush1.xpose.msra.mxu0 0.0
    %503 = vmatprep.subr.mxu0 0.0
    %504 = vmatpush1.xpose.msra.mxu0 0.0
    %505 = vmatprep.subr.mxu0 0.0
    %506 = vmatpush1.xpose.msra.mxu0 0.0
    %507 = vmatprep.subr.mxu0 0.0
    %508 = vmatpush1.xpose.msra.mxu0 0.0
    %509 = vmatprep.subr.mxu0 0.0
    %510 = vmatpush1.xpose.msra.mxu0 0.0
    %511 = vmatprep.subr.mxu0 0.0
    %512 = vmatpush1.xpose.msra.mxu0 %v479
    %513 = vmatprep.subr.mxu0 0.0
    %514 = vmatpush2.xpose.msra.mxu0 0.0
    %515 = vmatprep.subr.mxu0 0.0
    %516 = vmatpush2.xpose.msra.mxu0 0.0
    %517 = vmatprep.subr.mxu0 0.0
    %518 = vmatpush2.xpose.msra.mxu0 0.0
    %519 = vmatprep.subr.mxu0 0.0
    %520 = vmatpush2.xpose.msra.mxu0 0.0
    %521 = vmatprep.subr.mxu0 0.0
    %522 = vmatpush2.xpose.msra.mxu0 0.0
    %523 = vmatprep.subr.mxu0 0.0
    %524 = vmatpush2.xpose.msra.mxu0 0.0
    %525 = vmatprep.subr.mxu0 0.0
    %526 = vmatpush2.xpose.msra.mxu0 0.0
    %527 = vmatprep.subr.mxu0 0.0
    %528 = vmatpush2.xpose.msra.mxu0 0.0
    %529 = vmatprep.subr.mxu0 0.0
    %530 = vmatpush2.xpose.msra.mxu0 0.0
    %531 = vmatprep.subr.mxu0 0.0
    %532 = vmatpush2.xpose.msra.mxu0 0.0
    %533 = vmatprep.subr.mxu0 0.0
    %534 = vmatpush2.xpose.msra.mxu0 0.0
    %535 = vmatprep.subr.mxu0 0.0
    %536 = vmatpush2.xpose.msra.mxu0 0.0
    %537 = vmatprep.subr.mxu0 0.0
    %538 = vmatpush2.xpose.msra.mxu0 0.0
    %539 = vmatprep.subr.mxu0 0.0
    %540 = vmatpush2.xpose.msra.mxu0 0.0
    %541 = vmatprep.subr.mxu0 0.0
    %542 = vmatpush2.xpose.msra.mxu0 0.0
    %543 = vmatprep.subr.mxu0 0.0
    %544 = vmatpush2.xpose.msra.mxu0 0.0
    %545 = vmatprep.mubr.f32.mxu0 0.0
    %546 = vmatmul.mubr.f32.gmra.mxu0 %v477
    %v547 = vpop.f32.mrf.mxu0
    %v548 = vadd.f32 0.0, %v547
    %v549 = vpop.f32.mrf.mxu0
    %550 = vdwg.mxu0
    %551 = vrot.lane.b32.xlu0 %v165, 96
    %v552 = vpop.permute.xlu0 %551
    %v553 = vsel %vm172, %v165, 0
    %v555 = vsel %vm172, %v552, 0
    %557 = vmatprep.subr.mxu0 0.0
    %558 = vmatpush1.xpose.msra.mxu0 0.0
    %559 = vmatprep.subr.mxu0 0.0
    %560 = vmatpush1.xpose.msra.mxu0 0.0
    %561 = vmatprep.subr.mxu0 0.0
    %562 = vmatpush1.xpose.msra.mxu0 0.0
    %563 = vmatprep.subr.mxu0 0.0
    %564 = vmatpush1.xpose.msra.mxu0 0.0
    %565 = vmatprep.subr.mxu0 0.0
    %566 = vmatpush1.xpose.msra.mxu0 0.0
    %567 = vmatprep.subr.mxu0 0.0
    %568 = vmatpush1.xpose.msra.mxu0 0.0
    %569 = vmatprep.subr.mxu0 0.0
    %570 = vmatpush1.xpose.msra.mxu0 0.0
    %571 = vmatprep.subr.mxu0 0.0
    %572 = vmatpush1.xpose.msra.mxu0 0.0
    %573 = vmatprep.subr.mxu0 0.0
    %574 = vmatpush1.xpose.msra.mxu0 0.0
    %575 = vmatprep.subr.mxu0 0.0
    %576 = vmatpush1.xpose.msra.mxu0 0.0
    %577 = vmatprep.subr.mxu0 0.0
    %578 = vmatpush1.xpose.msra.mxu0 0.0
    %579 = vmatprep.subr.mxu0 0.0
    %580 = vmatpush1.xpose.msra.mxu0 0.0
    %581 = vmatprep.subr.mxu0 0.0
    %582 = vmatpush1.xpose.msra.mxu0 0.0
    %583 = vmatprep.subr.mxu0 0.0
    %584 = vmatpush1.xpose.msra.mxu0 0.0
    %585 = vmatprep.subr.mxu0 0.0
    %586 = vmatpush1.xpose.msra.mxu0 0.0
    %587 = vmatprep.subr.mxu0 0.0
    %588 = vmatpush1.xpose.msra.mxu0 %v555
    %589 = vmatprep.subr.mxu0 0.0
    %590 = vmatpush2.xpose.msra.mxu0 0.0
    %591 = vmatprep.subr.mxu0 0.0
    %592 = vmatpush2.xpose.msra.mxu0 0.0
    %593 = vmatprep.subr.mxu0 0.0
    %594 = vmatpush2.xpose.msra.mxu0 0.0
    %595 = vmatprep.subr.mxu0 0.0
    %596 = vmatpush2.xpose.msra.mxu0 0.0
    %597 = vmatprep.subr.mxu0 0.0
    %598 = vmatpush2.xpose.msra.mxu0 0.0
    %599 = vmatprep.subr.mxu0 0.0
    %600 = vmatpush2.xpose.msra.mxu0 0.0
    %601 = vmatprep.subr.mxu0 0.0
    %602 = vmatpush2.xpose.msra.mxu0 0.0
    %603 = vmatprep.subr.mxu0 0.0
    %604 = vmatpush2.xpose.msra.mxu0 0.0
    %605 = vmatprep.subr.mxu0 0.0
    %606 = vmatpush2.xpose.msra.mxu0 0.0
    %607 = vmatprep.subr.mxu0 0.0
    %608 = vmatpush2.xpose.msra.mxu0 0.0
    %609 = vmatprep.subr.mxu0 0.0
    %610 = vmatpush2.xpose.msra.mxu0 0.0
    %611 = vmatprep.subr.mxu0 0.0
    %612 = vmatpush2.xpose.msra.mxu0 0.0
    %613 = vmatprep.subr.mxu0 0.0
    %614 = vmatpush2.xpose.msra.mxu0 0.0
    %615 = vmatprep.subr.mxu0 0.0
    %616 = vmatpush2.xpose.msra.mxu0 0.0
    %617 = vmatprep.subr.mxu0 0.0
    %618 = vmatpush2.xpose.msra.mxu0 0.0
    %619 = vmatprep.subr.mxu0 0.0
    %620 = vmatpush2.xpose.msra.mxu0 0.0
    %621 = vmatprep.mubr.f32.mxu0 0.0
    %622 = vmatmul.mubr.f32.gmra.mxu0 %v553
    %v623 = vpop.f32.mrf.mxu0
    %v624 = vadd.f32 0.0, %v623
    %v625 = vpop.f32.mrf.mxu0
    %626 = vdwg.mxu0
    %627 = vrot.lane.b32.xlu0 %v167, 96
    %v628 = vpop.permute.xlu0 %627
    %v629 = vsel %vm172, %v167, 0
    %v631 = vsel %vm172, %v628, 0
    %633 = vmatprep.subr.mxu0 0.0
    %634 = vmatpush1.xpose.msra.mxu0 0.0
    %635 = vmatprep.subr.mxu0 0.0
    %636 = vmatpush1.xpose.msra.mxu0 0.0
    %637 = vmatprep.subr.mxu0 0.0
    %638 = vmatpush1.xpose.msra.mxu0 0.0
    %639 = vmatprep.subr.mxu0 0.0
    %640 = vmatpush1.xpose.msra.mxu0 0.0
    %641 = vmatprep.subr.mxu0 0.0
    %642 = vmatpush1.xpose.msra.mxu0 0.0
    %643 = vmatprep.subr.mxu0 0.0
    %644 = vmatpush1.xpose.msra.mxu0 0.0
    %645 = vmatprep.subr.mxu0 0.0
    %646 = vmatpush1.xpose.msra.mxu0 0.0
    %647 = vmatprep.subr.mxu0 0.0
    %648 = vmatpush1.xpose.msra.mxu0 0.0
    %649 = vmatprep.subr.mxu0 0.0
    %650 = vmatpush1.xpose.msra.mxu0 0.0
    %651 = vmatprep.subr.mxu0 0.0
    %652 = vmatpush1.xpose.msra.mxu0 0.0
    %653 = vmatprep.subr.mxu0 0.0
    %654 = vmatpush1.xpose.msra.mxu0 0.0
    %655 = vmatprep.subr.mxu0 0.0
    %656 = vmatpush1.xpose.msra.mxu0 0.0
    %657 = vmatprep.subr.mxu0 0.0
    %658 = vmatpush1.xpose.msra.mxu0 0.0
    %659 = vmatprep.subr.mxu0 0.0
    %660 = vmatpush1.xpose.msra.mxu0 0.0
    %661 = vmatprep.subr.mxu0 0.0
    %662 = vmatpush1.xpose.msra.mxu0 0.0
    %663 = vmatprep.subr.mxu0 0.0
    %664 = vmatpush1.xpose.msra.mxu0 %v631
    %665 = vmatprep.subr.mxu0 0.0
    %666 = vmatpush2.xpose.msra.mxu0 0.0
    %667 = vmatprep.subr.mxu0 0.0
    %668 = vmatpush2.xpose.msra.mxu0 0.0
    %669 = vmatprep.subr.mxu0 0.0
    %670 = vmatpush2.xpose.msra.mxu0 0.0
    %671 = vmatprep.subr.mxu0 0.0
    %672 = vmatpush2.xpose.msra.mxu0 0.0
    %673 = vmatprep.subr.mxu0 0.0
    %674 = vmatpush2.xpose.msra.mxu0 0.0
    %675 = vmatprep.subr.mxu0 0.0
    %676 = vmatpush2.xpose.msra.mxu0 0.0
    %677 = vmatprep.subr.mxu0 0.0
    %678 = vmatpush2.xpose.msra.mxu0 0.0
    %679 = vmatprep.subr.mxu0 0.0
    %680 = vmatpush2.xpose.msra.mxu0 0.0
    %681 = vmatprep.subr.mxu0 0.0
    %682 = vmatpush2.xpose.msra.mxu0 0.0
    %683 = vmatprep.subr.mxu0 0.0
    %684 = vmatpush2.xpose.msra.mxu0 0.0
    %685 = vmatprep.subr.mxu0 0.0
    %686 = vmatpush2.xpose.msra.mxu0 0.0
    %687 = vmatprep.subr.mxu0 0.0
    %688 = vmatpush2.xpose.msra.mxu0 0.0
    %689 = vmatprep.subr.mxu0 0.0
    %690 = vmatpush2.xpose.msra.mxu0 0.0
    %691 = vmatprep.subr.mxu0 0.0
    %692 = vmatpush2.xpose.msra.mxu0 0.0
    %693 = vmatprep.subr.mxu0 0.0
    %694 = vmatpush2.xpose.msra.mxu0 0.0
    %695 = vmatprep.subr.mxu0 0.0
    %696 = vmatpush2.xpose.msra.mxu0 0.0
    %697 = vmatprep.mubr.f32.mxu0 0.0
    %698 = vmatmul.mubr.f32.gmra.mxu0 %v629
    %v699 = vpop.f32.mrf.mxu0
    %v700 = vadd.f32 0.0, %v699
    %v701 = vpop.f32.mrf.mxu0
    %702 = vdwg.mxu0
    %703 = vrot.lane.b32.xlu0 %v169, 96
    %v704 = vpop.permute.xlu0 %703
    %v705 = vsel %vm172, %v169, 0
    %v707 = vsel %vm172, %v704, 0
    %709 = vmatprep.subr.mxu0 0.0
    %710 = vmatpush1.xpose.msra.mxu0 0.0
    %711 = vmatprep.subr.mxu0 0.0
    %712 = vmatpush1.xpose.msra.mxu0 0.0
    %713 = vmatprep.subr.mxu0 0.0
    %714 = vmatpush1.xpose.msra.mxu0 0.0
    %715 = vmatprep.subr.mxu0 0.0
    %716 = vmatpush1.xpose.msra.mxu0 0.0
    %717 = vmatprep.subr.mxu0 0.0
    %718 = vmatpush1.xpose.msra.mxu0 0.0
    %719 = vmatprep.subr.mxu0 0.0
    %720 = vmatpush1.xpose.msra.mxu0 0.0
    %721 = vmatprep.subr.mxu0 0.0
    %722 = vmatpush1.xpose.msra.mxu0 0.0
    %723 = vmatprep.subr.mxu0 0.0
    %724 = vmatpush1.xpose.msra.mxu0 0.0
    %725 = vmatprep.subr.mxu0 0.0
    %726 = vmatpush1.xpose.msra.mxu0 0.0
    %727 = vmatprep.subr.mxu0 0.0
    %728 = vmatpush1.xpose.msra.mxu0 0.0
    %729 = vmatprep.subr.mxu0 0.0
    %730 = vmatpush1.xpose.msra.mxu0 0.0
    %731 = vmatprep.subr.mxu0 0.0
    %732 = vmatpush1.xpose.msra.mxu0 0.0
    %733 = vmatprep.subr.mxu0 0.0
    %734 = vmatpush1.xpose.msra.mxu0 0.0
    %735 = vmatprep.subr.mxu0 0.0
    %736 = vmatpush1.xpose.msra.mxu0 0.0
    %737 = vmatprep.subr.mxu0 0.0
    %738 = vmatpush1.xpose.msra.mxu0 0.0
    %739 = vmatprep.subr.mxu0 0.0
    %740 = vmatpush1.xpose.msra.mxu0 %v707
    %741 = vmatprep.subr.mxu0 0.0
    %742 = vmatpush2.xpose.msra.mxu0 0.0
    %743 = vmatprep.subr.mxu0 0.0
    %744 = vmatpush2.xpose.msra.mxu0 0.0
    %745 = vmatprep.subr.mxu0 0.0
    %746 = vmatpush2.xpose.msra.mxu0 0.0
    %747 = vmatprep.subr.mxu0 0.0
    %748 = vmatpush2.xpose.msra.mxu0 0.0
    %749 = vmatprep.subr.mxu0 0.0
    %750 = vmatpush2.xpose.msra.mxu0 0.0
    %751 = vmatprep.subr.mxu0 0.0
    %752 = vmatpush2.xpose.msra.mxu0 0.0
    %753 = vmatprep.subr.mxu0 0.0
    %754 = vmatpush2.xpose.msra.mxu0 0.0
    %755 = vmatprep.subr.mxu0 0.0
    %756 = vmatpush2.xpose.msra.mxu0 0.0
    %757 = vmatprep.subr.mxu0 0.0
    %758 = vmatpush2.xpose.msra.mxu0 0.0
    %759 = vmatprep.subr.mxu0 0.0
    %760 = vmatpush2.xpose.msra.mxu0 0.0
    %761 = vmatprep.subr.mxu0 0.0
    %762 = vmatpush2.xpose.msra.mxu0 0.0
    %763 = vmatprep.subr.mxu0 0.0
    %764 = vmatpush2.xpose.msra.mxu0 0.0
    %765 = vmatprep.subr.mxu0 0.0
    %766 = vmatpush2.xpose.msra.mxu0 0.0
    %767 = vmatprep.subr.mxu0 0.0
    %768 = vmatpush2.xpose.msra.mxu0 0.0
    %769 = vmatprep.subr.mxu0 0.0
    %770 = vmatpush2.xpose.msra.mxu0 0.0
    %771 = vmatprep.subr.mxu0 0.0
    %772 = vmatpush2.xpose.msra.mxu0 0.0
    %773 = vmatprep.mubr.f32.mxu0 0.0
    %774 = vmatmul.mubr.f32.gmra.mxu0 %v705
    %v775 = vpop.f32.mrf.mxu0
    %v776 = vadd.f32 0.0, %v775
    %v777 = vpop.f32.mrf.mxu0
    %778 = vdwg.mxu0
    %v779 = vlaneseq
    %v780 = vshrl.u32 %v779, 7
    %v781 = vlaneseq
    %v782 = vand.u32 %v781, 127
    %vm783 = vcmp.ge.s32.totalorder %v780, %v782
    %v784 = vsel %vm783, 1, 0
    %vm785 = vcmp.eq.s32.totalorder %v784, 1
    %v786 = vsel %vm785, %v244, -inf
    %v787 = vsel %vm785, %v320, -inf
    %v788 = vsel %vm785, %v396, -inf
    %v789 = vsel %vm785, %v472, -inf
    %v790 = vsel %vm785, %v548, -inf
    %v791 = vsel %vm785, %v624, -inf
    %v792 = vsel %vm785, %v700, -inf
    %v793 = vsel %vm785, %v776, -inf
    %v794 = vsel %vm172, %v786, -inf
    %795 = vmax.xlane.f32.xlu0 %v794
    %v796 = vpop.xlane.xlu0 %795
    %v797 = vsel %vm172, %v787, -inf
    %798 = vmax.xlane.f32.xlu0 %v797
    %v799 = vpop.xlane.xlu0 %798
    %v800 = vsel %vm172, %v788, -inf
    %801 = vmax.xlane.f32.xlu0 %v800
    %v802 = vpop.xlane.xlu0 %801
    %v803 = vsel %vm172, %v789, -inf
    %804 = vmax.xlane.f32.xlu0 %v803
    %v805 = vpop.xlane.xlu0 %804
    %v806 = vsel %vm172, %v790, -inf
    %807 = vmax.xlane.f32.xlu0 %v806
    %v808 = vpop.xlane.xlu0 %807
    %v809 = vsel %vm172, %v791, -inf
    %810 = vmax.xlane.f32.xlu0 %v809
    %v811 = vpop.xlane.xlu0 %810
    %v812 = vsel %vm172, %v792, -inf
    %813 = vmax.xlane.f32.xlu0 %v812
    %v814 = vpop.xlane.xlu0 %813
    %v815 = vsel %vm172, %v793, -inf
    %816 = vmax.xlane.f32.xlu0 %v815
    %v817 = vpop.xlane.xlu0 %816
    %v818 = vsub.f32 %v786, %v796
    %v819 = vsub.f32 %v787, %v799
    %v820 = vsub.f32 %v788, %v802
    %v821 = vsub.f32 %v789, %v805
    %v822 = vsub.f32 %v790, %v808
    %v823 = vsub.f32 %v791, %v811
    %v824 = vsub.f32 %v792, %v814
    %v825 = vsub.f32 %v793, %v817
    %v826 = vmul.f32 %v818, 1.442695
    %v827 = vpow.pop %v826
    %v828 = vmul.f32 %v819, 1.442695
    %v829 = vpow.pop %v828
    %v830 = vmul.f32 %v820, 1.442695
    %v831 = vpow.pop %v830
    %v832 = vmul.f32 %v821, 1.442695
    %v833 = vpow.pop %v832
    %v834 = vmul.f32 %v822, 1.442695
    %v835 = vpow.pop %v834
    %v836 = vmul.f32 %v823, 1.442695
    %v837 = vpow.pop %v836
    %v838 = vmul.f32 %v824, 1.442695
    %v839 = vpow.pop %v838
    %v840 = vmul.f32 %v825, 1.442695
    %v841 = vpow.pop %v840
    %v842 = vsel %vm172, %v827, 0.0
    %843 = vadd.xlane.f32.xlu0 %v842
    %v844 = vpop.xlane.xlu0 %843
    %v845 = vsel %vm172, %v829, 0.0
    %846 = vadd.xlane.f32.xlu0 %v845
    %v847 = vpop.xlane.xlu0 %846
    %v848 = vsel %vm172, %v831, 0.0
    %849 = vadd.xlane.f32.xlu0 %v848
    %v850 = vpop.xlane.xlu0 %849
    %v851 = vsel %vm172, %v833, 0.0
    %852 = vadd.xlane.f32.xlu0 %v851
    %v853 = vpop.xlane.xlu0 %852
    %v854 = vsel %vm172, %v835, 0.0
    %855 = vadd.xlane.f32.xlu0 %v854
    %v856 = vpop.xlane.xlu0 %855
    %v857 = vsel %vm172, %v837, 0.0
    %858 = vadd.xlane.f32.xlu0 %v857
    %v859 = vpop.xlane.xlu0 %858
    %v860 = vsel %vm172, %v839, 0.0
    %861 = vadd.xlane.f32.xlu0 %v860
    %v862 = vpop.xlane.xlu0 %861
    %v863 = vsel %vm172, %v841, 0.0
    %864 = vadd.xlane.f32.xlu0 %v863
    %v865 = vpop.xlane.xlu0 %864
    %v866 = vrcp.pop %v844
    %v867 = vmul.f32 1.0, %v866
    %v868 = vrcp.pop %v847
    %v869 = vmul.f32 1.0, %v868
    %v870 = vrcp.pop %v850
    %v871 = vmul.f32 1.0, %v870
    %v872 = vrcp.pop %v853
    %v873 = vmul.f32 1.0, %v872
    %v874 = vrcp.pop %v856
    %v875 = vmul.f32 1.0, %v874
    %v876 = vrcp.pop %v859
    %v877 = vmul.f32 1.0, %v876
    %v878 = vrcp.pop %v862
    %v879 = vmul.f32 1.0, %v878
    %v880 = vrcp.pop %v865
    %v881 = vmul.f32 1.0, %v880
    %v882 = vmul.f32 %v827, %v867
    %v883 = vmul.f32 %v829, %v869
    %v884 = vmul.f32 %v831, %v871
    %v885 = vmul.f32 %v833, %v873
    %v886 = vmul.f32 %v835, %v875
    %v887 = vmul.f32 %v837, %v877
    %v888 = vmul.f32 %v839, %v879
    %v889 = vmul.f32 %v841, %v881
    %890 = vrot.lane.b32.xlu0 %v148, 64
    %v891 = vpop.permute.xlu0 %890
    %v894 = vsel %vm172, %v882, 0
    %896 = vmatprep.subr.mxu0 0.0
    %897 = vmatpush1.msra.mxu0 0.0
    %898 = vmatprep.subr.mxu0 0.0
    %899 = vmatpush1.msra.mxu0 0.0
    %900 = vmatprep.subr.mxu0 0.0
    %901 = vmatpush1.msra.mxu0 0.0
    %902 = vmatprep.subr.mxu0 0.0
    %903 = vmatpush1.msra.mxu0 0.0
    %904 = vmatprep.subr.mxu0 0.0
    %905 = vmatpush1.msra.mxu0 0.0
    %906 = vmatprep.subr.mxu0 0.0
    %907 = vmatpush1.msra.mxu0 0.0
    %908 = vmatprep.subr.mxu0 0.0
    %909 = vmatpush1.msra.mxu0 0.0
    %910 = vmatprep.subr.mxu0 0.0
    %911 = vmatpush1.msra.mxu0 0.0
    %912 = vmatprep.subr.mxu0 0.0
    %913 = vmatpush1.msra.mxu0 0.0
    %914 = vmatprep.subr.mxu0 0.0
    %915 = vmatpush1.msra.mxu0 0.0
    %916 = vmatprep.subr.mxu0 0.0
    %917 = vmatpush1.msra.mxu0 0.0
    %918 = vmatprep.subr.mxu0 0.0
    %919 = vmatpush1.msra.mxu0 0.0
    %920 = vmatprep.subr.mxu0 0.0
    %921 = vmatpush1.msra.mxu0 0.0
    %922 = vmatprep.subr.mxu0 0.0
    %923 = vmatpush1.msra.mxu0 0.0
    %924 = vmatprep.subr.mxu0 0.0
    %925 = vmatpush1.msra.mxu0 0.0
    %926 = vmatprep.subr.mxu0 0.0
    %927 = vmatpush1.msra.mxu0 %v891
    %928 = vmatprep.subr.mxu0 0.0
    %929 = vmatpush2.msra.mxu0 0.0
    %930 = vmatprep.subr.mxu0 0.0
    %931 = vmatpush2.msra.mxu0 0.0
    %932 = vmatprep.subr.mxu0 0.0
    %933 = vmatpush2.msra.mxu0 0.0
    %934 = vmatprep.subr.mxu0 0.0
    %935 = vmatpush2.msra.mxu0 0.0
    %936 = vmatprep.subr.mxu0 0.0
    %937 = vmatpush2.msra.mxu0 0.0
    %938 = vmatprep.subr.mxu0 0.0
    %939 = vmatpush2.msra.mxu0 0.0
    %940 = vmatprep.subr.mxu0 0.0
    %941 = vmatpush2.msra.mxu0 0.0
    %942 = vmatprep.subr.mxu0 0.0
    %943 = vmatpush2.msra.mxu0 0.0
    %944 = vmatprep.subr.mxu0 0.0
    %945 = vmatpush2.msra.mxu0 0.0
    %946 = vmatprep.subr.mxu0 0.0
    %947 = vmatpush2.msra.mxu0 0.0
    %948 = vmatprep.subr.mxu0 0.0
    %949 = vmatpush2.msra.mxu0 0.0
    %950 = vmatprep.subr.mxu0 0.0
    %951 = vmatpush2.msra.mxu0 0.0
    %952 = vmatprep.subr.mxu0 0.0
    %953 = vmatpush2.msra.mxu0 0.0
    %954 = vmatprep.subr.mxu0 0.0
    %955 = vmatpush2.msra.mxu0 0.0
    %956 = vmatprep.subr.mxu0 0.0
    %957 = vmatpush2.msra.mxu0 0.0
    %958 = vmatprep.subr.mxu0 0.0
    %959 = vmatpush2.msra.mxu0 0.0
    %960 = vmatprep.mubr.f32.mxu0 0.0
    %961 = vmatmul.mubr.f32.gmra.mxu0 %v894
    %v962 = vpop.f32.mrf.mxu0
    %v963 = vadd.f32 0.0, %v962
    %v964 = vpop.f32.mrf.mxu0
    %965 = vdwg.mxu0
    %966 = vrot.lane.b32.xlu0 %v153, 64
    %v967 = vpop.permute.xlu0 %966
    %v970 = vsel %vm172, %v883, 0
    %972 = vmatprep.subr.mxu0 0.0
    %973 = vmatpush1.msra.mxu0 0.0
    %974 = vmatprep.subr.mxu0 0.0
    %975 = vmatpush1.msra.mxu0 0.0
    %976 = vmatprep.subr.mxu0 0.0
    %977 = vmatpush1.msra.mxu0 0.0
    %978 = vmatprep.subr.mxu0 0.0
    %979 = vmatpush1.msra.mxu0 0.0
    %980 = vmatprep.subr.mxu0 0.0
    %981 = vmatpush1.msra.mxu0 0.0
    %982 = vmatprep.subr.mxu0 0.0
    %983 = vmatpush1.msra.mxu0 0.0
    %984 = vmatprep.subr.mxu0 0.0
    %985 = vmatpush1.msra.mxu0 0.0
    %986 = vmatprep.subr.mxu0 0.0
    %987 = vmatpush1.msra.mxu0 0.0
    %988 = vmatprep.subr.mxu0 0.0
    %989 = vmatpush1.msra.mxu0 0.0
    %990 = vmatprep.subr.mxu0 0.0
    %991 = vmatpush1.msra.mxu0 0.0
    %992 = vmatprep.subr.mxu0 0.0
    %993 = vmatpush1.msra.mxu0 0.0
    %994 = vmatprep.subr.mxu0 0.0
    %995 = vmatpush1.msra.mxu0 0.0
    %996 = vmatprep.subr.mxu0 0.0
    %997 = vmatpush1.msra.mxu0 0.0
    %998 = vmatprep.subr.mxu0 0.0
    %999 = vmatpush1.msra.mxu0 0.0
    %1000 = vmatprep.subr.mxu0 0.0
    %1001 = vmatpush1.msra.mxu0 0.0
    %1002 = vmatprep.subr.mxu0 0.0
    %1003 = vmatpush1.msra.mxu0 %v967
    %1004 = vmatprep.subr.mxu0 0.0
    %1005 = vmatpush2.msra.mxu0 0.0
    %1006 = vmatprep.subr.mxu0 0.0
    %1007 = vmatpush2.msra.mxu0 0.0
    %1008 = vmatprep.subr.mxu0 0.0
    %1009 = vmatpush2.msra.mxu0 0.0
    %1010 = vmatprep.subr.mxu0 0.0
    %1011 = vmatpush2.msra.mxu0 0.0
    %1012 = vmatprep.subr.mxu0 0.0
    %1013 = vmatpush2.msra.mxu0 0.0
    %1014 = vmatprep.subr.mxu0 0.0
    %1015 = vmatpush2.msra.mxu0 0.0
    %1016 = vmatprep.subr.mxu0 0.0
    %1017 = vmatpush2.msra.mxu0 0.0
    %1018 = vmatprep.subr.mxu0 0.0
    %1019 = vmatpush2.msra.mxu0 0.0
    %1020 = vmatprep.subr.mxu0 0.0
    %1021 = vmatpush2.msra.mxu0 0.0
    %1022 = vmatprep.subr.mxu0 0.0
    %1023 = vmatpush2.msra.mxu0 0.0
    %1024 = vmatprep.subr.mxu0 0.0
    %1025 = vmatpush2.msra.mxu0 0.0
    %1026 = vmatprep.subr.mxu0 0.0
    %1027 = vmatpush2.msra.mxu0 0.0
    %1028 = vmatprep.subr.mxu0 0.0
    %1029 = vmatpush2.msra.mxu0 0.0
    %1030 = vmatprep.subr.mxu0 0.0
    %1031 = vmatpush2.msra.mxu0 0.0
    %1032 = vmatprep.subr.mxu0 0.0
    %1033 = vmatpush2.msra.mxu0 0.0
    %1034 = vmatprep.subr.mxu0 0.0
    %1035 = vmatpush2.msra.mxu0 0.0
    %1036 = vmatprep.mubr.f32.mxu0 0.0
    %1037 = vmatmul.mubr.f32.gmra.mxu0 %v970
    %v1038 = vpop.f32.mrf.mxu0
    %v1039 = vadd.f32 0.0, %v1038
    %v1040 = vpop.f32.mrf.mxu0
    %1041 = vdwg.mxu0
    %1042 = vrot.lane.b32.xlu0 %v159, 64
    %v1043 = vpop.permute.xlu0 %1042
    %v1046 = vsel %vm172, %v884, 0
    %1048 = vmatprep.subr.mxu0 0.0
    %1049 = vmatpush1.msra.mxu0 0.0
    %1050 = vmatprep.subr.mxu0 0.0
    %1051 = vmatpush1.msra.mxu0 0.0
    %1052 = vmatprep.subr.mxu0 0.0
    %1053 = vmatpush1.msra.mxu0 0.0
    %1054 = vmatprep.subr.mxu0 0.0
    %1055 = vmatpush1.msra.mxu0 0.0
    %1056 = vmatprep.subr.mxu0 0.0
    %1057 = vmatpush1.msra.mxu0 0.0
    %1058 = vmatprep.subr.mxu0 0.0
    %1059 = vmatpush1.msra.mxu0 0.0
    %1060 = vmatprep.subr.mxu0 0.0
    %1061 = vmatpush1.msra.mxu0 0.0
    %1062 = vmatprep.subr.mxu0 0.0
    %1063 = vmatpush1.msra.mxu0 0.0
    %1064 = vmatprep.subr.mxu0 0.0
    %1065 = vmatpush1.msra.mxu0 0.0
    %1066 = vmatprep.subr.mxu0 0.0
    %1067 = vmatpush1.msra.mxu0 0.0
    %1068 = vmatprep.subr.mxu0 0.0
    %1069 = vmatpush1.msra.mxu0 0.0
    %1070 = vmatprep.subr.mxu0 0.0
    %1071 = vmatpush1.msra.mxu0 0.0
    %1072 = vmatprep.subr.mxu0 0.0
    %1073 = vmatpush1.msra.mxu0 0.0
    %1074 = vmatprep.subr.mxu0 0.0
    %1075 = vmatpush1.msra.mxu0 0.0
    %1076 = vmatprep.subr.mxu0 0.0
    %1077 = vmatpush1.msra.mxu0 0.0
    %1078 = vmatprep.subr.mxu0 0.0
    %1079 = vmatpush1.msra.mxu0 %v1043
    %1080 = vmatprep.subr.mxu0 0.0
    %1081 = vmatpush2.msra.mxu0 0.0
    %1082 = vmatprep.subr.mxu0 0.0
    %1083 = vmatpush2.msra.mxu0 0.0
    %1084 = vmatprep.subr.mxu0 0.0
    %1085 = vmatpush2.msra.mxu0 0.0
    %1086 = vmatprep.subr.mxu0 0.0
    %1087 = vmatpush2.msra.mxu0 0.0
    %1088 = vmatprep.subr.mxu0 0.0
    %1089 = vmatpush2.msra.mxu0 0.0
    %1090 = vmatprep.subr.mxu0 0.0
    %1091 = vmatpush2.msra.mxu0 0.0
    %1092 = vmatprep.subr.mxu0 0.0
    %1093 = vmatpush2.msra.mxu0 0.0
    %1094 = vmatprep.subr.mxu0 0.0
    %1095 = vmatpush2.msra.mxu0 0.0
    %1096 = vmatprep.subr.mxu0 0.0
    %1097 = vmatpush2.msra.mxu0 0.0
    %1098 = vmatprep.subr.mxu0 0.0
    %1099 = vmatpush2.msra.mxu0 0.0
    %1100 = vmatprep.subr.mxu0 0.0
    %1101 = vmatpush2.msra.mxu0 0.0
    %1102 = vmatprep.subr.mxu0 0.0
    %1103 = vmatpush2.msra.mxu0 0.0
    %1104 = vmatprep.subr.mxu0 0.0
    %1105 = vmatpush2.msra.mxu0 0.0
    %1106 = vmatprep.subr.mxu0 0.0
    %1107 = vmatpush2.msra.mxu0 0.0
    %1108 = vmatprep.subr.mxu0 0.0
    %1109 = vmatpush2.msra.mxu0 0.0
    %1110 = vmatprep.subr.mxu0 0.0
    %1111 = vmatpush2.msra.mxu0 0.0
    %1112 = vmatprep.mubr.f32.mxu0 0.0
    %1113 = vmatmul.mubr.f32.gmra.mxu0 %v1046
    %v1114 = vpop.f32.mrf.mxu0
    %v1115 = vadd.f32 0.0, %v1114
    %v1116 = vpop.f32.mrf.mxu0
    %1117 = vdwg.mxu0
    %1118 = vrot.lane.b32.xlu0 %v161, 64
    %v1119 = vpop.permute.xlu0 %1118
    %v1122 = vsel %vm172, %v885, 0
    %1124 = vmatprep.subr.mxu0 0.0
    %1125 = vmatpush1.msra.mxu0 0.0
    %1126 = vmatprep.subr.mxu0 0.0
    %1127 = vmatpush1.msra.mxu0 0.0
    %1128 = vmatprep.subr.mxu0 0.0
    %1129 = vmatpush1.msra.mxu0 0.0
    %1130 = vmatprep.subr.mxu0 0.0
    %1131 = vmatpush1.msra.mxu0 0.0
    %1132 = vmatprep.subr.mxu0 0.0
    %1133 = vmatpush1.msra.mxu0 0.0
    %1134 = vmatprep.subr.mxu0 0.0
    %1135 = vmatpush1.msra.mxu0 0.0
    %1136 = vmatprep.subr.mxu0 0.0
    %1137 = vmatpush1.msra.mxu0 0.0
    %1138 = vmatprep.subr.mxu0 0.0
    %1139 = vmatpush1.msra.mxu0 0.0
    %1140 = vmatprep.subr.mxu0 0.0
    %1141 = vmatpush1.msra.mxu0 0.0
    %1142 = vmatprep.subr.mxu0 0.0
    %1143 = vmatpush1.msra.mxu0 0.0
    %1144 = vmatprep.subr.mxu0 0.0
    %1145 = vmatpush1.msra.mxu0 0.0
    %1146 = vmatprep.subr.mxu0 0.0
    %1147 = vmatpush1.msra.mxu0 0.0
    %1148 = vmatprep.subr.mxu0 0.0
    %1149 = vmatpush1.msra.mxu0 0.0
    %1150 = vmatprep.subr.mxu0 0.0
    %1151 = vmatpush1.msra.mxu0 0.0
    %1152 = vmatprep.subr.mxu0 0.0
    %1153 = vmatpush1.msra.mxu0 0.0
    %1154 = vmatprep.subr.mxu0 0.0
    %1155 = vmatpush1.msra.mxu0 %v1119
    %1156 = vmatprep.subr.mxu0 0.0
    %1157 = vmatpush2.msra.mxu0 0.0
    %1158 = vmatprep.subr.mxu0 0.0
    %1159 = vmatpush2.msra.mxu0 0.0
    %1160 = vmatprep.subr.mxu0 0.0
    %1161 = vmatpush2.msra.mxu0 0.0
    %1162 = vmatprep.subr.mxu0 0.0
    %1163 = vmatpush2.msra.mxu0 0.0
    %1164 = vmatprep.subr.mxu0 0.0
    %1165 = vmatpush2.msra.mxu0 0.0
    %1166 = vmatprep.subr.mxu0 0.0
    %1167 = vmatpush2.msra.mxu0 0.0
    %1168 = vmatprep.subr.mxu0 0.0
    %1169 = vmatpush2.msra.mxu0 0.0
    %1170 = vmatprep.subr.mxu0 0.0
    %1171 = vmatpush2.msra.mxu0 0.0
    %1172 = vmatprep.subr.mxu0 0.0
    %1173 = vmatpush2.msra.mxu0 0.0
    %1174 = vmatprep.subr.mxu0 0.0
    %1175 = vmatpush2.msra.mxu0 0.0
    %1176 = vmatprep.subr.mxu0 0.0
    %1177 = vmatpush2.msra.mxu0 0.0
    %1178 = vmatprep.subr.mxu0 0.0
    %1179 = vmatpush2.msra.mxu0 0.0
    %1180 = vmatprep.subr.mxu0 0.0
    %1181 = vmatpush2.msra.mxu0 0.0
    %1182 = vmatprep.subr.mxu0 0.0
    %1183 = vmatpush2.msra.mxu0 0.0
    %1184 = vmatprep.subr.mxu0 0.0
    %1185 = vmatpush2.msra.mxu0 0.0
    %1186 = vmatprep.subr.mxu0 0.0
    %1187 = vmatpush2.msra.mxu0 0.0
    %1188 = vmatprep.mubr.f32.mxu0 0.0
    %1189 = vmatmul.mubr.f32.gmra.mxu0 %v1122
    %v1190 = vpop.f32.mrf.mxu0
    %v1191 = vadd.f32 0.0, %v1190
    %v1192 = vpop.f32.mrf.mxu0
    %1193 = vdwg.mxu0
    %1194 = vrot.lane.b32.xlu0 %v163, 64
    %v1195 = vpop.permute.xlu0 %1194
    %v1198 = vsel %vm172, %v886, 0
    %1200 = vmatprep.subr.mxu0 0.0
    %1201 = vmatpush1.msra.mxu0 0.0
    %1202 = vmatprep.subr.mxu0 0.0
    %1203 = vmatpush1.msra.mxu0 0.0
    %1204 = vmatprep.subr.mxu0 0.0
    %1205 = vmatpush1.msra.mxu0 0.0
    %1206 = vmatprep.subr.mxu0 0.0
    %1207 = vmatpush1.msra.mxu0 0.0
    %1208 = vmatprep.subr.mxu0 0.0
    %1209 = vmatpush1.msra.mxu0 0.0
    %1210 = vmatprep.subr.mxu0 0.0
    %1211 = vmatpush1.msra.mxu0 0.0
    %1212 = vmatprep.subr.mxu0 0.0
    %1213 = vmatpush1.msra.mxu0 0.0
    %1214 = vmatprep.subr.mxu0 0.0
    %1215 = vmatpush1.msra.mxu0 0.0
    %1216 = vmatprep.subr.mxu0 0.0
    %1217 = vmatpush1.msra.mxu0 0.0
    %1218 = vmatprep.subr.mxu0 0.0
    %1219 = vmatpush1.msra.mxu0 0.0
    %1220 = vmatprep.subr.mxu0 0.0
    %1221 = vmatpush1.msra.mxu0 0.0
    %1222 = vmatprep.subr.mxu0 0.0
    %1223 = vmatpush1.msra.mxu0 0.0
    %1224 = vmatprep.subr.mxu0 0.0
    %1225 = vmatpush1.msra.mxu0 0.0
    %1226 = vmatprep.subr.mxu0 0.0
    %1227 = vmatpush1.msra.mxu0 0.0
    %1228 = vmatprep.subr.mxu0 0.0
    %1229 = vmatpush1.msra.mxu0 0.0
    %1230 = vmatprep.subr.mxu0 0.0
    %1231 = vmatpush1.msra.mxu0 %v1195
    %1232 = vmatprep.subr.mxu0 0.0
    %1233 = vmatpush2.msra.mxu0 0.0
    %1234 = vmatprep.subr.mxu0 0.0
    %1235 = vmatpush2.msra.mxu0 0.0
    %1236 = vmatprep.subr.mxu0 0.0
    %1237 = vmatpush2.msra.mxu0 0.0
    %1238 = vmatprep.subr.mxu0 0.0
    %1239 = vmatpush2.msra.mxu0 0.0
    %1240 = vmatprep.subr.mxu0 0.0
    %1241 = vmatpush2.msra.mxu0 0.0
    %1242 = vmatprep.subr.mxu0 0.0
    %1243 = vmatpush2.msra.mxu0 0.0
    %1244 = vmatprep.subr.mxu0 0.0
    %1245 = vmatpush2.msra.mxu0 0.0
    %1246 = vmatprep.subr.mxu0 0.0
    %1247 = vmatpush2.msra.mxu0 0.0
    %1248 = vmatprep.subr.mxu0 0.0
    %1249 = vmatpush2.msra.mxu0 0.0
    %1250 = vmatprep.subr.mxu0 0.0
    %1251 = vmatpush2.msra.mxu0 0.0
    %1252 = vmatprep.subr.mxu0 0.0
    %1253 = vmatpush2.msra.mxu0 0.0
    %1254 = vmatprep.subr.mxu0 0.0
    %1255 = vmatpush2.msra.mxu0 0.0
    %1256 = vmatprep.subr.mxu0 0.0
    %1257 = vmatpush2.msra.mxu0 0.0
    %1258 = vmatprep.subr.mxu0 0.0
    %1259 = vmatpush2.msra.mxu0 0.0
    %1260 = vmatprep.subr.mxu0 0.0
    %1261 = vmatpush2.msra.mxu0 0.0
    %1262 = vmatprep.subr.mxu0 0.0
    %1263 = vmatpush2.msra.mxu0 0.0
    %1264 = vmatprep.mubr.f32.mxu0 0.0
    %1265 = vmatmul.mubr.f32.gmra.mxu0 %v1198
    %v1266 = vpop.f32.mrf.mxu0
    %v1267 = vadd.f32 0.0, %v1266
    %v1268 = vpop.f32.mrf.mxu0
    %1269 = vdwg.mxu0
    %1270 = vrot.lane.b32.xlu0 %v165, 64
    %v1271 = vpop.permute.xlu0 %1270
    %v1274 = vsel %vm172, %v887, 0
    %1276 = vmatprep.subr.mxu0 0.0
    %1277 = vmatpush1.msra.mxu0 0.0
    %1278 = vmatprep.subr.mxu0 0.0
    %1279 = vmatpush1.msra.mxu0 0.0
    %1280 = vmatprep.subr.mxu0 0.0
    %1281 = vmatpush1.msra.mxu0 0.0
    %1282 = vmatprep.subr.mxu0 0.0
    %1283 = vmatpush1.msra.mxu0 0.0
    %1284 = vmatprep.subr.mxu0 0.0
    %1285 = vmatpush1.msra.mxu0 0.0
    %1286 = vmatprep.subr.mxu0 0.0
    %1287 = vmatpush1.msra.mxu0 0.0
    %1288 = vmatprep.subr.mxu0 0.0
    %1289 = vmatpush1.msra.mxu0 0.0
    %1290 = vmatprep.subr.mxu0 0.0
    %1291 = vmatpush1.msra.mxu0 0.0
    %1292 = vmatprep.subr.mxu0 0.0
    %1293 = vmatpush1.msra.mxu0 0.0
    %1294 = vmatprep.subr.mxu0 0.0
    %1295 = vmatpush1.msra.mxu0 0.0
    %1296 = vmatprep.subr.mxu0 0.0
    %1297 = vmatpush1.msra.mxu0 0.0
    %1298 = vmatprep.subr.mxu0 0.0
    %1299 = vmatpush1.msra.mxu0 0.0
    %1300 = vmatprep.subr.mxu0 0.0
    %1301 = vmatpush1.msra.mxu0 0.0
    %1302 = vmatprep.subr.mxu0 0.0
    %1303 = vmatpush1.msra.mxu0 0.0
    %1304 = vmatprep.subr.mxu0 0.0
    %1305 = vmatpush1.msra.mxu0 0.0
    %1306 = vmatprep.subr.mxu0 0.0
    %1307 = vmatpush1.msra.mxu0 %v1271
    %1308 = vmatprep.subr.mxu0 0.0
    %1309 = vmatpush2.msra.mxu0 0.0
    %1310 = vmatprep.subr.mxu0 0.0
    %1311 = vmatpush2.msra.mxu0 0.0
    %1312 = vmatprep.subr.mxu0 0.0
    %1313 = vmatpush2.msra.mxu0 0.0
    %1314 = vmatprep.subr.mxu0 0.0
    %1315 = vmatpush2.msra.mxu0 0.0
    %1316 = vmatprep.subr.mxu0 0.0
    %1317 = vmatpush2.msra.mxu0 0.0
    %1318 = vmatprep.subr.mxu0 0.0
    %1319 = vmatpush2.msra.mxu0 0.0
    %1320 = vmatprep.subr.mxu0 0.0
    %1321 = vmatpush2.msra.mxu0 0.0
    %1322 = vmatprep.subr.mxu0 0.0
    %1323 = vmatpush2.msra.mxu0 0.0
    %1324 = vmatprep.subr.mxu0 0.0
    %1325 = vmatpush2.msra.mxu0 0.0
    %1326 = vmatprep.subr.mxu0 0.0
    %1327 = vmatpush2.msra.mxu0 0.0
    %1328 = vmatprep.subr.mxu0 0.0
    %1329 = vmatpush2.msra.mxu0 0.0
    %1330 = vmatprep.subr.mxu0 0.0
    %1331 = vmatpush2.msra.mxu0 0.0
    %1332 = vmatprep.subr.mxu0 0.0
    %1333 = vmatpush2.msra.mxu0 0.0
    %1334 = vmatprep.subr.mxu0 0.0
    %1335 = vmatpush2.msra.mxu0 0.0
    %1336 = vmatprep.subr.mxu0 0.0
    %1337 = vmatpush2.msra.mxu0 0.0
    %1338 = vmatprep.subr.mxu0 0.0
    %1339 = vmatpush2.msra.mxu0 0.0
    %1340 = vmatprep.mubr.f32.mxu0 0.0
    %1341 = vmatmul.mubr.f32.gmra.mxu0 %v1274
    %v1342 = vpop.f32.mrf.mxu0
    %v1343 = vadd.f32 0.0, %v1342
    %v1344 = vpop.f32.mrf.mxu0
    %1345 = vdwg.mxu0
    %1346 = vrot.lane.b32.xlu0 %v167, 64
    %v1347 = vpop.permute.xlu0 %1346
    %v1350 = vsel %vm172, %v888, 0
    %1352 = vmatprep.subr.mxu0 0.0
    %1353 = vmatpush1.msra.mxu0 0.0
    %1354 = vmatprep.subr.mxu0 0.0
    %1355 = vmatpush1.msra.mxu0 0.0
    %1356 = vmatprep.subr.mxu0 0.0
    %1357 = vmatpush1.msra.mxu0 0.0
    %1358 = vmatprep.subr.mxu0 0.0
    %1359 = vmatpush1.msra.mxu0 0.0
    %1360 = vmatprep.subr.mxu0 0.0
    %1361 = vmatpush1.msra.mxu0 0.0
    %1362 = vmatprep.subr.mxu0 0.0
    %1363 = vmatpush1.msra.mxu0 0.0
    %1364 = vmatprep.subr.mxu0 0.0
    %1365 = vmatpush1.msra.mxu0 0.0
    %1366 = vmatprep.subr.mxu0 0.0
    %1367 = vmatpush1.msra.mxu0 0.0
    %1368 = vmatprep.subr.mxu0 0.0
    %1369 = vmatpush1.msra.mxu0 0.0
    %1370 = vmatprep.subr.mxu0 0.0
    %1371 = vmatpush1.msra.mxu0 0.0
    %1372 = vmatprep.subr.mxu0 0.0
    %1373 = vmatpush1.msra.mxu0 0.0
    %1374 = vmatprep.subr.mxu0 0.0
    %1375 = vmatpush1.msra.mxu0 0.0
    %1376 = vmatprep.subr.mxu0 0.0
    %1377 = vmatpush1.msra.mxu0 0.0
    %1378 = vmatprep.subr.mxu0 0.0
    %1379 = vmatpush1.msra.mxu0 0.0
    %1380 = vmatprep.subr.mxu0 0.0
    %1381 = vmatpush1.msra.mxu0 0.0
    %1382 = vmatprep.subr.mxu0 0.0
    %1383 = vmatpush1.msra.mxu0 %v1347
    %1384 = vmatprep.subr.mxu0 0.0
    %1385 = vmatpush2.msra.mxu0 0.0
    %1386 = vmatprep.subr.mxu0 0.0
    %1387 = vmatpush2.msra.mxu0 0.0
    %1388 = vmatprep.subr.mxu0 0.0
    %1389 = vmatpush2.msra.mxu0 0.0
    %1390 = vmatprep.subr.mxu0 0.0
    %1391 = vmatpush2.msra.mxu0 0.0
    %1392 = vmatprep.subr.mxu0 0.0
    %1393 = vmatpush2.msra.mxu0 0.0
    %1394 = vmatprep.subr.mxu0 0.0
    %1395 = vmatpush2.msra.mxu0 0.0
    %1396 = vmatprep.subr.mxu0 0.0
    %1397 = vmatpush2.msra.mxu0 0.0
    %1398 = vmatprep.subr.mxu0 0.0
    %1399 = vmatpush2.msra.mxu0 0.0
    %1400 = vmatprep.subr.mxu0 0.0
    %1401 = vmatpush2.msra.mxu0 0.0
    %1402 = vmatprep.subr.mxu0 0.0
    %1403 = vmatpush2.msra.mxu0 0.0
    %1404 = vmatprep.subr.mxu0 0.0
    %1405 = vmatpush2.msra.mxu0 0.0
    %1406 = vmatprep.subr.mxu0 0.0
    %1407 = vmatpush2.msra.mxu0 0.0
    %1408 = vmatprep.subr.mxu0 0.0
    %1409 = vmatpush2.msra.mxu0 0.0
    %1410 = vmatprep.subr.mxu0 0.0
    %1411 = vmatpush2.msra.mxu0 0.0
    %1412 = vmatprep.subr.mxu0 0.0
    %1413 = vmatpush2.msra.mxu0 0.0
    %1414 = vmatprep.subr.mxu0 0.0
    %1415 = vmatpush2.msra.mxu0 0.0
    %1416 = vmatprep.mubr.f32.mxu0 0.0
    %1417 = vmatmul.mubr.f32.gmra.mxu0 %v1350
    %v1418 = vpop.f32.mrf.mxu0
    %v1419 = vadd.f32 0.0, %v1418
    %v1420 = vpop.f32.mrf.mxu0
    %1421 = vdwg.mxu0
    %1422 = vrot.lane.b32.xlu0 %v169, 64
    %v1423 = vpop.permute.xlu0 %1422
    %v1426 = vsel %vm172, %v889, 0
    %1428 = vmatprep.subr.mxu0 0.0
    %1429 = vmatpush1.msra.mxu0 0.0
    %1430 = vmatprep.subr.mxu0 0.0
    %1431 = vmatpush1.msra.mxu0 0.0
    %1432 = vmatprep.subr.mxu0 0.0
    %1433 = vmatpush1.msra.mxu0 0.0
    %1434 = vmatprep.subr.mxu0 0.0
    %1435 = vmatpush1.msra.mxu0 0.0
    %1436 = vmatprep.subr.mxu0 0.0
    %1437 = vmatpush1.msra.mxu0 0.0
    %1438 = vmatprep.subr.mxu0 0.0
    %1439 = vmatpush1.msra.mxu0 0.0
    %1440 = vmatprep.subr.mxu0 0.0
    %1441 = vmatpush1.msra.mxu0 0.0
    %1442 = vmatprep.subr.mxu0 0.0
    %1443 = vmatpush1.msra.mxu0 0.0
    %1444 = vmatprep.subr.mxu0 0.0
    %1445 = vmatpush1.msra.mxu0 0.0
    %1446 = vmatprep.subr.mxu0 0.0
    %1447 = vmatpush1.msra.mxu0 0.0
    %1448 = vmatprep.subr.mxu0 0.0
    %1449 = vmatpush1.msra.mxu0 0.0
    %1450 = vmatprep.subr.mxu0 0.0
    %1451 = vmatpush1.msra.mxu0 0.0
    %1452 = vmatprep.subr.mxu0 0.0
    %1453 = vmatpush1.msra.mxu0 0.0
    %1454 = vmatprep.subr.mxu0 0.0
    %1455 = vmatpush1.msra.mxu0 0.0
    %1456 = vmatprep.subr.mxu0 0.0
    %1457 = vmatpush1.msra.mxu0 0.0
    %1458 = vmatprep.subr.mxu0 0.0
    %1459 = vmatpush1.msra.mxu0 %v1423
    %1460 = vmatprep.subr.mxu0 0.0
    %1461 = vmatpush2.msra.mxu0 0.0
    %1462 = vmatprep.subr.mxu0 0.0
    %1463 = vmatpush2.msra.mxu0 0.0
    %1464 = vmatprep.subr.mxu0 0.0
    %1465 = vmatpush2.msra.mxu0 0.0
    %1466 = vmatprep.subr.mxu0 0.0
    %1467 = vmatpush2.msra.mxu0 0.0
    %1468 = vmatprep.subr.mxu0 0.0
    %1469 = vmatpush2.msra.mxu0 0.0
    %1470 = vmatprep.subr.mxu0 0.0
    %1471 = vmatpush2.msra.mxu0 0.0
    %1472 = vmatprep.subr.mxu0 0.0
    %1473 = vmatpush2.msra.mxu0 0.0
    %1474 = vmatprep.subr.mxu0 0.0
    %1475 = vmatpush2.msra.mxu0 0.0
    %1476 = vmatprep.subr.mxu0 0.0
    %1477 = vmatpush2.msra.mxu0 0.0
    %1478 = vmatprep.subr.mxu0 0.0
    %1479 = vmatpush2.msra.mxu0 0.0
    %1480 = vmatprep.subr.mxu0 0.0
    %1481 = vmatpush2.msra.mxu0 0.0
    %1482 = vmatprep.subr.mxu0 0.0
    %1483 = vmatpush2.msra.mxu0 0.0
    %1484 = vmatprep.subr.mxu0 0.0
    %1485 = vmatpush2.msra.mxu0 0.0
    %1486 = vmatprep.subr.mxu0 0.0
    %1487 = vmatpush2.msra.mxu0 0.0
    %1488 = vmatprep.subr.mxu0 0.0
    %1489 = vmatpush2.msra.mxu0 0.0
    %1490 = vmatprep.subr.mxu0 0.0
    %1491 = vmatpush2.msra.mxu0 0.0
    %1492 = vmatprep.mubr.f32.mxu0 0.0
    %1493 = vmatmul.mubr.f32.gmra.mxu0 %v1426
    %v1494 = vpop.f32.mrf.mxu0
    %v1495 = vadd.f32 0.0, %v1494
    %v1496 = vpop.f32.mrf.mxu0
    %1497 = vdwg.mxu0
    %1500 = vrot.lane.b32.xlu0 %v1115, 8
    %v1501 = vpop.permute.xlu0 %1500
    %1502 = vrot.lane.b32.xlu0 %v1191, 8
    %v1503 = vpop.permute.xlu0 %1502
    %1508 = vrot.lane.b32.xlu0 %v1267, 16
    %v1509 = vpop.permute.xlu0 %1508
    %1510 = vrot.lane.b32.xlu0 %v1343, 16
    %v1511 = vpop.permute.xlu0 %1510
    %1516 = vrot.lane.b32.xlu0 %v1419, 24
    %v1517 = vpop.permute.xlu0 %1516
    %1518 = vrot.lane.b32.xlu0 %v1495, 24
    %v1519 = vpop.permute.xlu0 %1518
    %v1522 = vsel %vm172, %v963, %v1501
    %v1523 = vsel %vm172, %v1039, %v1503
    %vm1524 = vcmask 130048
    %v1525 = vsel %vm1524, %v1522, %v1509
    %v1526 = vsel %vm1524, %v1523, %v1511
    %vm1527 = vcmask 195584
    %v1528 = vsel %vm1527, %v1525, %v1517
    %v1529 = vsel %vm1527, %v1526, %v1519
    %v1530 = vld [vmem:[#allocation6] sm:$0xff]
    %v1531 = vld [vmem:[#allocation6 + $0x8] sm:$0xff]
    %v1532 = vld [vmem:[#allocation6 + $0x10] sm:$0xff]
    %v1533 = vld [vmem:[#allocation6 + $0x18] sm:$0xff]
    %v1534 = vld [vmem:[%s4] sm:$0x1]
    %v1536 = vlaneseq
    %v1537 = vshrl.u32 %v1536, 7
    %v1538 = vsub.s32 0, %v1537
    %v1539 = vrot.slane %v1534, %v1538
    %v1542 = vsel %vm74, %v1528, 0
    %v1545 = vsel %vm74, %v1529, 0
    %1547 = vmatprep.subr.mxu0 0.0
    %1548 = vmatpush1.msra.mxu0 0.0
    %1549 = vmatprep.subr.mxu0 0.0
    %1550 = vmatpush1.msra.mxu0 0.0
    %1551 = vmatprep.subr.mxu0 0.0
    %1552 = vmatpush1.msra.mxu0 0.0
    %1553 = vmatprep.subr.mxu0 0.0
    %1554 = vmatpush1.msra.mxu0 0.0
    %1555 = vmatprep.subr.mxu0 0.0
    %1556 = vmatpush1.msra.mxu0 0.0
    %1557 = vmatprep.subr.mxu0 0.0
    %1558 = vmatpush1.msra.mxu0 0.0
    %1559 = vmatprep.subr.mxu0 0.0
    %1560 = vmatpush1.msra.mxu0 0.0
    %1561 = vmatprep.subr.mxu0 0.0
    %1562 = vmatpush1.msra.mxu0 0.0
    %1563 = vmatprep.subr.mxu0 0.0
    %1564 = vmatpush1.msra.mxu0 0.0
    %1565 = vmatprep.subr.mxu0 0.0
    %1566 = vmatpush1.msra.mxu0 0.0
    %1567 = vmatprep.subr.mxu0 0.0
    %1568 = vmatpush1.msra.mxu0 0.0
    %1569 = vmatprep.subr.mxu0 0.0
    %1570 = vmatpush1.msra.mxu0 0.0
    %1571 = vmatprep.subr.mxu0 0.0
    %1572 = vmatpush1.msra.mxu0 %v1533
    %1573 = vmatprep.subr.mxu0 0.0
    %1574 = vmatpush1.msra.mxu0 %v1532
    %1575 = vmatprep.subr.mxu0 0.0
    %1576 = vmatpush1.msra.mxu0 %v1531
    %1577 = vmatprep.subr.mxu0 0.0
    %1578 = vmatpush1.msra.mxu0 %v1530
    %1579 = vmatprep.subr.mxu0 0.0
    %1580 = vmatpush2.msra.mxu0 0.0
    %1581 = vmatprep.subr.mxu0 0.0
    %1582 = vmatpush2.msra.mxu0 0.0
    %1583 = vmatprep.subr.mxu0 0.0
    %1584 = vmatpush2.msra.mxu0 0.0
    %1585 = vmatprep.subr.mxu0 0.0
    %1586 = vmatpush2.msra.mxu0 0.0
    %1587 = vmatprep.subr.mxu0 0.0
    %1588 = vmatpush2.msra.mxu0 0.0
    %1589 = vmatprep.subr.mxu0 0.0
    %1590 = vmatpush2.msra.mxu0 0.0
    %1591 = vmatprep.subr.mxu0 0.0
    %1592 = vmatpush2.msra.mxu0 0.0
    %1593 = vmatprep.subr.mxu0 0.0
    %1594 = vmatpush2.msra.mxu0 0.0
    %1595 = vmatprep.subr.mxu0 0.0
    %1596 = vmatpush2.msra.mxu0 0.0
    %1597 = vmatprep.subr.mxu0 0.0
    %1598 = vmatpush2.msra.mxu0 0.0
    %1599 = vmatprep.subr.mxu0 0.0
    %1600 = vmatpush2.msra.mxu0 0.0
    %1601 = vmatprep.subr.mxu0 0.0
    %1602 = vmatpush2.msra.mxu0 0.0
    %1603 = vmatprep.subr.mxu0 0.0
    %1604 = vmatpush2.msra.mxu0 0.0
    %1605 = vmatprep.subr.mxu0 0.0
    %1606 = vmatpush2.msra.mxu0 0.0
    %1607 = vmatprep.subr.mxu0 0.0
    %1608 = vmatpush2.msra.mxu0 0.0
    %1609 = vmatprep.subr.mxu0 0.0
    %1610 = vmatpush2.msra.mxu0 0.0
    %1611 = vmatprep.mubr.f32.mxu0 0.0
    %1612 = vmatmul.mubr.f32.gmra.mxu0 %v1542
    %v1613 = vpop.f32.mrf.mxu0
    %v1614 = vadd.f32 %v1539, %v1613
    %v1615 = vpop.f32.mrf.mxu0
    %1616 = vmatprep.mubr.f32.mxu0 0.0
    %1617 = vmatmul.mubr.f32.gmra.mxu0 %v1545
    %v1618 = vpop.f32.mrf.mxu0
    %v1619 = vadd.f32 %v1539, %v1618
    %v1620 = vpop.f32.mrf.mxu0
    %1621 = vdwg.mxu0
    %v1622 = vsel %vm74, %v1614, %v148
    %v1623 = vsel %vm74, %v1619, %v153
    %vm1624 = vcmask 523264
    %v1625 = vsel %vm1624, %v1622, %v148
    %v1626 = vsel %vm1624, %v1623, %v153
    %vm1627 = vcmask 785408
    %1628 = vst.msk [vmem:[%s5] sm:$0xff] %vm1627, %v1625
    %1629 = vst.msk [vmem:[%s5 + $0x8] sm:$0xff] %vm1627, %v1626
    // Predicated region
    $region34: #{causal_self_attention.1} parent=1 // pred_check
      _
    $region35: #{causal_self_attention.1} parent=1 // pred_check_branch
      %1631 = sbr.rel (0) target = $region37
    $region36: #{causal_self_attention.1} parent=1 // pred_region
      _
    $region37: #{causal_self_attention.1} parent=1 // pred_fallthru
      _
    // Predicated region
    $region38: #{causal_self_attention.1} parent=1 // pred_check
      _
    $region39: #{causal_self_attention.1} parent=1 // pred_check_branch
      %1633 = sbr.rel (0) target = $region41
    $region40: #{causal_self_attention.1} parent=1 // pred_region
      _
    $region41: #{causal_self_attention.1} parent=1 // pred_fallthru
      _
    %1634 = vsyncpa [#allocation3], 1
    %1635 = vsyncpa [#allocation5], 1

</llo_original>
